<compile_context>
chip_gen: v7x
topology: tpu7x:2x2x1
jax: 0.10.0
libtpu: 0.0.40
codegen_flags: <defaults>
</compile_context>

<pallas_src>
import jax
import jax.numpy as jnp
from jax.experimental import pallas as pl
from jax.experimental.pallas import tpu as pltpu


# ---------------------------------------------------------------------------
# Wrapper-side constant builders
# ---------------------------------------------------------------------------
def _interp_matrix(n_in, n_out):
    """(n_out, n_in) interpolation matrix: bilinear, align_corners=True."""
    if n_in == 1 or n_out == 1:
        return jnp.zeros((n_out, n_in), jnp.float32).at[:, 0].set(1.0)
    src = jnp.arange(n_out, dtype=jnp.float32) * (n_in - 1) / (n_out - 1)
    lo = jnp.clip(jnp.floor(src).astype(jnp.int32), 0, n_in - 1)
    hi = jnp.clip(lo + 1, 0, n_in - 1)
    frac = src - lo.astype(jnp.float32)
    return ((1.0 - frac)[:, None] * jax.nn.one_hot(lo, n_in, dtype=jnp.float32)
            + frac[:, None] * jax.nn.one_hot(hi, n_in, dtype=jnp.float32))


def _fold_bn(w, gamma, beta, mean, var, eps=1e-5):
    """Fold eval-mode BatchNorm into a bias-free conv weight (OIHW)."""
    s = gamma / jnp.sqrt(var + eps)
    return w * s[:, None, None, None], beta - mean * s


def _band_matrices_3x3(w_oihw, wo, pad_out):
    """3x3 conv (pad=1) as three row-band matrices over channel-major W lanes.

    Input rows have lane layout  ci*(wo+2) + jp (jp: zero-padded W coordinate).
    Output rows have lane layout co*n_w + j + off; with pad_out the output is
    already W-zero-padded (border columns are zero) for the next conv.
      m[di, ci*(wo+2) + j + dj, co*n_w + j + off] = w[co, ci, di, dj]
    """
    cout, cin = w_oihw.shape[0], w_oihw.shape[1]
    wp = wo + 2
    n_w, off = (wo + 2, 1) if pad_out else (wo, 0)
    ci = jnp.arange(cin)[:, None, None]
    co = jnp.arange(cout)[None, :, None]
    j = jnp.arange(wo)[None, None, :]
    mats = []
    for di in range(3):
        m = jnp.zeros((cin * wp, cout * n_w), jnp.float32)
        for dj in range(3):
            rows = jnp.broadcast_to(ci * wp + j + dj, (cin, cout, wo))
            cols = jnp.broadcast_to(co * n_w + j + off, (cin, cout, wo))
            vals = jnp.broadcast_to(w_oihw[:, :, di, dj].T[:, :, None],
                                    (cin, cout, wo))
            m = m.at[rows, cols].add(vals)
        mats.append(m)
    return jnp.stack(mats, axis=0)


def _band_matrix_1x1(w_oi, wo):
    """1x1 conv as a band matrix: padded channel-major rows -> unpadded rows."""
    cout, cin = w_oi.shape
    wp = wo + 2
    ci = jnp.arange(cin)[:, None, None]
    co = jnp.arange(cout)[None, :, None]
    j = jnp.arange(wo)[None, None, :]
    rows = jnp.broadcast_to(ci * wp + j + 1, (cin, cout, wo))
    cols = jnp.broadcast_to(co * wo + j, (cin, cout, wo))
    vals = jnp.broadcast_to(w_oi.T[:, :, None], (cin, cout, wo))
    return jnp.zeros((cin * wp, cout * wo), jnp.float32).at[rows, cols].add(vals)


# ---------------------------------------------------------------------------
# Fused UpBlock kernel (one grid step per batch image)
# ---------------------------------------------------------------------------
def _upblock_kernel(x_ref, ah_ref, awtc_ref, m1_ref, b1_ref, m2_ref, ms_ref,
                    bo_ref, o_ref, xpad, y1pad):
    cin = x_ref.shape[1]
    cout, ho, wo = o_ref.shape[1], o_ref.shape[2], o_ref.shape[3]

    # Zero only the two 1-row H-halo strips (W-halo lanes stay zero by construction
    # of awtc / the band matrices; interiors are fully overwritten every step).
    xpad[0:1, :] = jnp.zeros((1, xpad.shape[1]), xpad.dtype)
    xpad[ho + 1:ho + 2, :] = jnp.zeros((1, xpad.shape[1]), xpad.dtype)
    y1pad[0:1, :] = jnp.zeros((1, y1pad.shape[1]), y1pad.dtype)
    y1pad[ho + 1:ho + 2, :] = jnp.zeros((1, y1pad.shape[1]), y1pad.dtype)

    # Bilinear upsample (align_corners=True), separable: W-interp + channel-major
    # placement + W-zero-padding folded into awtc[c], then one H-interp matmul.
    s = jnp.dot(x_ref[0, 0], awtc_ref[0], preferred_element_type=jnp.float32)
    for c in range(1, cin):
        s = s + jnp.dot(x_ref[0, c], awtc_ref[c],
                        preferred_element_type=jnp.float32)
    xu = jnp.dot(ah_ref[...], s, preferred_element_type=jnp.float32)
    xpad[1:ho + 1, :] = xu.astype(xpad.dtype)

    # conv1 (3x3, pad 1) + folded BN1 + ReLU: three row-band matmuls.
    x0 = xpad[0:ho, :]
    x1 = xpad[1:ho + 1, :]
    x2 = xpad[2:ho + 2, :]
    a1 = (jnp.dot(x0, m1_ref[0], preferred_element_type=jnp.float32)
          + jnp.dot(x1, m1_ref[1], preferred_element_type=jnp.float32)
          + jnp.dot(x2, m1_ref[2], preferred_element_type=jnp.float32))
    y1 = jnp.maximum(a1 + b1_ref[...], 0.0)          # W borders stay exactly zero
    y1pad[1:ho + 1, :] = y1.astype(y1pad.dtype)

    # Shortcut (1x1 conv + folded BN) initializes the conv2 accumulator.
    acc = jnp.dot(x1, ms_ref[...], preferred_element_type=jnp.float32)

    # conv2 (3x3, pad 1) + folded BN2, add shortcut bias, final ReLU.
    acc = acc + jnp.dot(y1pad[0:ho, :], m2_ref[0],
                        preferred_element_type=jnp.float32)
    acc = acc + jnp.dot(y1pad[1:ho + 1, :], m2_ref[1],
                        preferred_element_type=jnp.float32)
    acc = acc + jnp.dot(y1pad[2:ho + 2, :], m2_ref[2],
                        preferred_element_type=jnp.float32)
    out = jnp.maximum(acc + bo_ref[...], 0.0)        # (Ho, Cout*Wo), channel-major

    # Write NCHW planes: channel-major lanes -> contiguous per-channel slices.
    for co in range(cout):
        o_ref[0, co] = out[:, co * wo:(co + 1) * wo].astype(o_ref.dtype)


def up_block(x, scale, conv1_w, bn1, conv2_w, bn2, sc_w, bn_sc):
    B, cin, H, W = x.shape
    cout = conv1_w.shape[0]
    ho, wo = H * scale, W * scale
    wp = wo + 2
    dt = x.dtype

    # Fold eval-mode BatchNorm into the conv weights / biases.
    w1f, b1 = _fold_bn(conv1_w, *bn1)
    w2f, b2 = _fold_bn(conv2_w, *bn2)
    wsf, bs = _fold_bn(sc_w, *bn_sc)

    # Upsample matrices (align_corners=True bilinear).
    ah = _interp_matrix(H, ho)                     # (Ho, H)
    awt = _interp_matrix(W, wo).T                  # (W, Wo)
    awtc = jnp.zeros((cin, W, cin * wp), jnp.float32)
    for c in range(cin):
        awtc = awtc.at[c, :, c * wp + 1:c * wp + 1 + wo].set(awt)

    # Conv row-band matrices (channel-major lane layout).
    m1 = _band_matrices_3x3(w1f, wo, pad_out=True)            # (3, cin*wp, cout*wp)
    m2 = _band_matrices_3x3(w2f, wo, pad_out=False)           # (3, cout*wp, cout*wo)
    ms = _band_matrix_1x1(wsf.reshape(cout, cin), wo)         # (cin*wp, cout*wo)

    # Bias rows (b1 masked to keep the W-halo lanes of y1pad exactly zero).
    wmask = jnp.zeros((wp,), jnp.float32).at[1:1 + wo].set(1.0)
    b1row = (b1[:, None] * wmask[None, :]).reshape(1, cout * wp)
    borow = jnp.repeat(b2 + bs, wo).reshape(1, cout * wo)

    return pl.pallas_call(
        _upblock_kernel,
        out_shape=jax.ShapeDtypeStruct((B, cout, ho, wo), dt),
        grid=(B,),
        in_specs=[
            pl.BlockSpec((1, cin, H, W), lambda b: (b, 0, 0, 0)),
            pl.BlockSpec((ho, H), lambda b: (0, 0)),
            pl.BlockSpec((cin, W, cin * wp), lambda b: (0, 0, 0)),
            pl.BlockSpec((3, cin * wp, cout * wp), lambda b: (0, 0, 0)),
            pl.BlockSpec((1, cout * wp), lambda b: (0, 0)),
            pl.BlockSpec((3, cout * wp, cout * wo), lambda b: (0, 0, 0)),
            pl.BlockSpec((cin * wp, cout * wo), lambda b: (0, 0)),
            pl.BlockSpec((1, cout * wo), lambda b: (0, 0)),
        ],
        out_specs=pl.BlockSpec((1, cout, ho, wo), lambda b: (b, 0, 0, 0)),
        scratch_shapes=[
            pltpu.VMEM((ho + 2, cin * wp), dt),    # padded upsampled plane
            pltpu.VMEM((ho + 2, cout * wp), dt),   # padded conv1 activation
        ],
        compiler_params=pltpu.CompilerParams(
            dimension_semantics=("parallel",)),
    )(x, ah.astype(dt), awtc.astype(dt), m1.astype(dt), b1row,
      m2.astype(dt), ms.astype(dt), borow)


# ---------------------------------------------------------------------------
# Pure-JAX reference (independent code path) matching the PyTorch forward.
# ---------------------------------------------------------------------------
def _conv2d_ref(x, w, padding):
    return jax.lax.conv_general_dilated(
        x, w, window_strides=(1, 1),
        padding=((padding, padding), (padding, padding)),
        dimension_numbers=('NCHW', 'OIHW', 'NCHW'))


def _bn_ref(x, gamma, beta, mean, var, eps=1e-5):
    inv = gamma / jnp.sqrt(var + eps)
    return (x - mean[None, :, None, None]) * inv[None, :, None, None] \
        + beta[None, :, None, None]


def _upsample_ref(x, scale):
    B, C, H, W = x.shape
    Ho, Wo = H * scale, W * scale
    hsrc = jnp.arange(Ho) * (H - 1) / (Ho - 1) if Ho > 1 else jnp.zeros((Ho,))
    wsrc = jnp.arange(Wo) * (W - 1) / (Wo - 1) if Wo > 1 else jnp.zeros((Wo,))
    h0 = jnp.clip(jnp.floor(hsrc).astype(jnp.int32), 0, H - 1)
    h1 = jnp.clip(h0 + 1, 0, H - 1)
    fh = (hsrc - h0)[None, None, :, None]
    w0 = jnp.clip(jnp.floor(wsrc).astype(jnp.int32), 0, W - 1)
    w1 = jnp.clip(w0 + 1, 0, W - 1)
    fw = (wsrc - w0)[None, None, None, :]
    xh = x[:, :, h0, :] * (1 - fh) + x[:, :, h1, :] * fh
    return xh[:, :, :, w0] * (1 - fw) + xh[:, :, :, w1] * fw


def up_block_ref(x, scale, conv1_w, bn1, conv2_w, bn2, sc_w, bn_sc):
    xu = _upsample_ref(x, scale)
    y = jnp.maximum(_bn_ref(_conv2d_ref(xu, conv1_w, 1), *bn1), 0.0)
    y = _bn_ref(_conv2d_ref(y, conv2_w, 1), *bn2)
    s = _bn_ref(_conv2d_ref(xu, sc_w, 0), *bn_sc)
    return jnp.maximum(y + s, 0.0)


if __name__ == "__main__":
    key = jax.random.PRNGKey(0)
    B, in_c, out_c, H, W, scale = 2, 4, 4, 16, 16, 2

    keys = jax.random.split(key, 7)
    x = jax.random.normal(keys[0], (B, in_c, H, W), dtype=jnp.float32)

    conv1_w = jax.random.normal(keys[1], (out_c, in_c, 3, 3), jnp.float32) * 0.2
    conv2_w = jax.random.normal(keys[2], (out_c, out_c, 3, 3), jnp.float32) * 0.2
    sc_w = jax.random.normal(keys[3], (out_c, in_c, 1, 1), jnp.float32) * 0.2

    def make_bn(k):
        k1, k2, k3, k4 = jax.random.split(k, 4)
        gamma = 1.0 + 0.1 * jax.random.normal(k1, (out_c,), jnp.float32)
        beta = 0.1 * jax.random.normal(k2, (out_c,), jnp.float32)
        mean = 0.1 * jax.random.normal(k3, (out_c,), jnp.float32)
        var = 1.0 + 0.1 * jax.random.uniform(k4, (out_c,), jnp.float32)
        return gamma, beta, mean, var

    bn1, bn2, bn_sc = make_bn(keys[4]), make_bn(keys[5]), make_bn(keys[6])

    out = up_block(x, scale, conv1_w, bn1, conv2_w, bn2, sc_w, bn_sc)
    out = jax.block_until_ready(out)

    ref = up_block_ref(x, scale, conv1_w, bn1, conv2_w, bn2, sc_w, bn_sc)
    assert out.shape == (B, out_c, H * scale, W * scale)
    assert jnp.allclose(out, ref, atol=1e-4, rtol=1e-4), "mismatch vs reference"

    print("KERNEL_OK")
</pallas_src>

<mosaic_0001>
module attributes {stable_mosaic.version = 11 : i64} {
  func.func @_upblock_kernel(%arg0: i32, %arg1: memref<1x4x16x16xf32, #tpu.memory_space<vmem>>, %arg2: memref<32x16xf32, #tpu.memory_space<vmem>>, %arg3: memref<4x16x136xf32, #tpu.memory_space<vmem>>, %arg4: memref<3x136x136xf32, #tpu.memory_space<vmem>>, %arg5: memref<1x136xf32, #tpu.memory_space<vmem>>, %arg6: memref<3x136x128xf32, #tpu.memory_space<vmem>>, %arg7: memref<136x128xf32, #tpu.memory_space<vmem>>, %arg8: memref<1x128xf32, #tpu.memory_space<vmem>>, %arg9: memref<1x4x32x32xf32, #tpu.memory_space<vmem>>, %arg10: memref<34x136xf32, #tpu.memory_space<vmem>>, %arg11: memref<34x136xf32, #tpu.memory_space<vmem>>) attributes {dimension_semantics = [#tpu.dimension_semantics<parallel>], iteration_bounds = array<i64: 2>, scalar_prefetch = 0 : i64, scratch_operands = 2 : i64, tpu.core_type = #tpu.core_type<tc>, window_params = [{transform_indices = @transform_0, window_bounds = array<i64: 1, 4, 16, 16>}, {pipeline_mode = #tpu.pipeline_mode<synchronous>, transform_indices = @transform_1, window_bounds = array<i64: 32, 16>}, {pipeline_mode = #tpu.pipeline_mode<synchronous>, transform_indices = @transform_2, window_bounds = array<i64: 4, 16, 136>}, {pipeline_mode = #tpu.pipeline_mode<synchronous>, transform_indices = @transform_3, window_bounds = array<i64: 3, 136, 136>}, {pipeline_mode = #tpu.pipeline_mode<synchronous>, transform_indices = @transform_4, window_bounds = array<i64: 1, 136>}, {pipeline_mode = #tpu.pipeline_mode<synchronous>, transform_indices = @transform_5, window_bounds = array<i64: 3, 136, 128>}, {pipeline_mode = #tpu.pipeline_mode<synchronous>, transform_indices = @transform_6, window_bounds = array<i64: 136, 128>}, {pipeline_mode = #tpu.pipeline_mode<synchronous>, transform_indices = @transform_7, window_bounds = array<i64: 1, 128>}, {transform_indices = @transform_8, window_bounds = array<i64: 1, 4, 32, 32>}]} {
    %cst = arith.constant 0.000000e+00 : f32
    %0 = vector.broadcast %cst : f32 to vector<1x136xf32>
    %c0 = arith.constant 0 : index
    %c0_0 = arith.constant 0 : index
    %1 = vector.load %arg10[%c0, %c0_0] : memref<34x136xf32, #tpu.memory_space<vmem>>, vector<1x136xf32>
    tpu.vector_store %arg10[%c0, %c0_0], %0 {strides = array<i32>} : memref<34x136xf32, #tpu.memory_space<vmem>>, vector<1x136xf32>,
    %cst_1 = arith.constant 0.000000e+00 : f32
    %2 = vector.broadcast %cst_1 : f32 to vector<1x136xf32>
    %c33 = arith.constant 33 : index
    %c0_2 = arith.constant 0 : index
    %3 = vector.load %arg10[%c33, %c0_2] : memref<34x136xf32, #tpu.memory_space<vmem>>, vector<1x136xf32>
    tpu.vector_store %arg10[%c33, %c0_2], %2 {strides = array<i32>} : memref<34x136xf32, #tpu.memory_space<vmem>>, vector<1x136xf32>,
    %cst_3 = arith.constant 0.000000e+00 : f32
    %4 = vector.broadcast %cst_3 : f32 to vector<1x136xf32>
    %c0_4 = arith.constant 0 : index
    %c0_5 = arith.constant 0 : index
    %5 = vector.load %arg11[%c0_4, %c0_5] : memref<34x136xf32, #tpu.memory_space<vmem>>, vector<1x136xf32>
    tpu.vector_store %arg11[%c0_4, %c0_5], %4 {strides = array<i32>} : memref<34x136xf32, #tpu.memory_space<vmem>>, vector<1x136xf32>,
    %cst_6 = arith.constant 0.000000e+00 : f32
    %6 = vector.broadcast %cst_6 : f32 to vector<1x136xf32>
    %c33_7 = arith.constant 33 : index
    %c0_8 = arith.constant 0 : index
    %7 = vector.load %arg11[%c33_7, %c0_8] : memref<34x136xf32, #tpu.memory_space<vmem>>, vector<1x136xf32>
    tpu.vector_store %arg11[%c33_7, %c0_8], %6 {strides = array<i32>} : memref<34x136xf32, #tpu.memory_space<vmem>>, vector<1x136xf32>,
    %c0_9 = arith.constant 0 : index
    %c0_10 = arith.constant 0 : index
    %c0_11 = arith.constant 0 : index
    %c0_12 = arith.constant 0 : index
    %8 = vector.load %arg1[%c0_9, %c0_10, %c0_11, %c0_12] : memref<1x4x16x16xf32, #tpu.memory_space<vmem>>, vector<1x1x16x16xf32>
    %9 = vector.shape_cast %8 : vector<1x1x16x16xf32> to vector<16x16xf32>
    %c0_13 = arith.constant 0 : index
    %c0_14 = arith.constant 0 : index
    %c0_15 = arith.constant 0 : index
    %10 = vector.load %arg3[%c0_13, %c0_14, %c0_15] : memref<4x16x136xf32, #tpu.memory_space<vmem>>, vector<1x16x136xf32>
    %11 = vector.shape_cast %10 : vector<1x16x136xf32> to vector<16x136xf32>
    %cst_16 = arith.constant dense<0.000000e+00> : vector<16x136xf32>
    %12 = tpu.matmul %9, %11, %cst_16 {dimension_numbers = #tpu.dot_dimension_numbers<[1], [0], [0], [1], [0, 0, 1, 1], [], []>} : vector<16x16xf32>, vector<16x136xf32>, vector<16x136xf32> -> vector<16x136xf32>
    %c0_17 = arith.constant 0 : index
    %c1 = arith.constant 1 : index
    %c0_18 = arith.constant 0 : index
    %c0_19 = arith.constant 0 : index
    %13 = vector.load %arg1[%c0_17, %c1, %c0_18, %c0_19] : memref<1x4x16x16xf32, #tpu.memory_space<vmem>>, vector<1x1x16x16xf32>
    %14 = vector.shape_cast %13 : vector<1x1x16x16xf32> to vector<16x16xf32>
    %c1_20 = arith.constant 1 : index
    %c0_21 = arith.constant 0 : index
    %c0_22 = arith.constant 0 : index
    %15 = vector.load %arg3[%c1_20, %c0_21, %c0_22] : memref<4x16x136xf32, #tpu.memory_space<vmem>>, vector<1x16x136xf32>
    %16 = vector.shape_cast %15 : vector<1x16x136xf32> to vector<16x136xf32>
    %cst_23 = arith.constant dense<0.000000e+00> : vector<16x136xf32>
    %17 = tpu.matmul %14, %16, %cst_23 {dimension_numbers = #tpu.dot_dimension_numbers<[1], [0], [0], [1], [0, 0, 1, 1], [], []>} : vector<16x16xf32>, vector<16x136xf32>, vector<16x136xf32> -> vector<16x136xf32>
    %18 = arith.addf %12, %17 : vector<16x136xf32>
    %c0_24 = arith.constant 0 : index
    %c2 = arith.constant 2 : index
    %c0_25 = arith.constant 0 : index
    %c0_26 = arith.constant 0 : index
    %19 = vector.load %arg1[%c0_24, %c2, %c0_25, %c0_26] : memref<1x4x16x16xf32, #tpu.memory_space<vmem>>, vector<1x1x16x16xf32>
    %20 = vector.shape_cast %19 : vector<1x1x16x16xf32> to vector<16x16xf32>
    %c2_27 = arith.constant 2 : index
    %c0_28 = arith.constant 0 : index
    %c0_29 = arith.constant 0 : index
    %21 = vector.load %arg3[%c2_27, %c0_28, %c0_29] : memref<4x16x136xf32, #tpu.memory_space<vmem>>, vector<1x16x136xf32>
    %22 = vector.shape_cast %21 : vector<1x16x136xf32> to vector<16x136xf32>
    %cst_30 = arith.constant dense<0.000000e+00> : vector<16x136xf32>
    %23 = tpu.matmul %20, %22, %cst_30 {dimension_numbers = #tpu.dot_dimension_numbers<[1], [0], [0], [1], [0, 0, 1, 1], [], []>} : vector<16x16xf32>, vector<16x136xf32>, vector<16x136xf32> -> vector<16x136xf32>
    %24 = arith.addf %18, %23 : vector<16x136xf32>
    %c0_31 = arith.constant 0 : index
    %c3 = arith.constant 3 : index
    %c0_32 = arith.constant 0 : index
    %c0_33 = arith.constant 0 : index
    %25 = vector.load %arg1[%c0_31, %c3, %c0_32, %c0_33] : memref<1x4x16x16xf32, #tpu.memory_space<vmem>>, vector<1x1x16x16xf32>
    %26 = vector.shape_cast %25 : vector<1x1x16x16xf32> to vector<16x16xf32>
    %c3_34 = arith.constant 3 : index
    %c0_35 = arith.constant 0 : index
    %c0_36 = arith.constant 0 : index
    %27 = vector.load %arg3[%c3_34, %c0_35, %c0_36] : memref<4x16x136xf32, #tpu.memory_space<vmem>>, vector<1x16x136xf32>
    %28 = vector.shape_cast %27 : vector<1x16x136xf32> to vector<16x136xf32>
    %cst_37 = arith.constant dense<0.000000e+00> : vector<16x136xf32>
    %29 = tpu.matmul %26, %28, %cst_37 {dimension_numbers = #tpu.dot_dimension_numbers<[1], [0], [0], [1], [0, 0, 1, 1], [], []>} : vector<16x16xf32>, vector<16x136xf32>, vector<16x136xf32> -> vector<16x136xf32>
    %30 = arith.addf %24, %29 : vector<16x136xf32>
    %c0_38 = arith.constant 0 : index
    %c0_39 = arith.constant 0 : index
    %31 = vector.load %arg2[%c0_38, %c0_39] : memref<32x16xf32, #tpu.memory_space<vmem>>, vector<32x16xf32>
    %cst_40 = arith.constant dense<0.000000e+00> : vector<32x136xf32>
    %32 = tpu.matmul %31, %30, %cst_40 {dimension_numbers = #tpu.dot_dimension_numbers<[1], [0], [0], [1], [0, 0, 1, 1], [], []>} : vector<32x16xf32>, vector<16x136xf32>, vector<32x136xf32> -> vector<32x136xf32>
    %c1_41 = arith.constant 1 : index
    %c0_42 = arith.constant 0 : index
    %33 = vector.load %arg10[%c1_41, %c0_42] : memref<34x136xf32, #tpu.memory_space<vmem>>, vector<32x136xf32>
    tpu.vector_store %arg10[%c1_41, %c0_42], %32 {strides = array<i32>} : memref<34x136xf32, #tpu.memory_space<vmem>>, vector<32x136xf32>,
    %c0_43 = arith.constant 0 : index
    %c0_44 = arith.constant 0 : index
    %34 = vector.load %arg10[%c0_43, %c0_44] : memref<34x136xf32, #tpu.memory_space<vmem>>, vector<32x136xf32>
    %c1_45 = arith.constant 1 : index
    %c0_46 = arith.constant 0 : index
    %35 = vector.load %arg10[%c1_45, %c0_46] : memref<34x136xf32, #tpu.memory_space<vmem>>, vector<32x136xf32>
    %c2_47 = arith.constant 2 : index
    %c0_48 = arith.constant 0 : index
    %36 = vector.load %arg10[%c2_47, %c0_48] : memref<34x136xf32, #tpu.memory_space<vmem>>, vector<32x136xf32>
    %c0_49 = arith.constant 0 : index
    %c0_50 = arith.constant 0 : index
    %c0_51 = arith.constant 0 : index
    %37 = vector.load %arg4[%c0_49, %c0_50, %c0_51] : memref<3x136x136xf32, #tpu.memory_space<vmem>>, vector<1x136x136xf32>
    %38 = vector.shape_cast %37 : vector<1x136x136xf32> to vector<136x136xf32>
    %cst_52 = arith.constant dense<0.000000e+00> : vector<32x136xf32>
    %39 = tpu.matmul %34, %38, %cst_52 {dimension_numbers = #tpu.dot_dimension_numbers<[1], [0], [0], [1], [0, 0, 1, 1], [], []>} : vector<32x136xf32>, vector<136x136xf32>, vector<32x136xf32> -> vector<32x136xf32>
    %c1_53 = arith.constant 1 : index
    %c0_54 = arith.constant 0 : index
    %c0_55 = arith.constant 0 : index
    %40 = vector.load %arg4[%c1_53, %c0_54, %c0_55] : memref<3x136x136xf32, #tpu.memory_space<vmem>>, vector<1x136x136xf32>
    %41 = vector.shape_cast %40 : vector<1x136x136xf32> to vector<136x136xf32>
    %cst_56 = arith.constant dense<0.000000e+00> : vector<32x136xf32>
    %42 = tpu.matmul %35, %41, %cst_56 {dimension_numbers = #tpu.dot_dimension_numbers<[1], [0], [0], [1], [0, 0, 1, 1], [], []>} : vector<32x136xf32>, vector<136x136xf32>, vector<32x136xf32> -> vector<32x136xf32>
    %43 = arith.addf %39, %42 : vector<32x136xf32>
    %c2_57 = arith.constant 2 : index
    %c0_58 = arith.constant 0 : index
    %c0_59 = arith.constant 0 : index
    %44 = vector.load %arg4[%c2_57, %c0_58, %c0_59] : memref<3x136x136xf32, #tpu.memory_space<vmem>>, vector<1x136x136xf32>
    %45 = vector.shape_cast %44 : vector<1x136x136xf32> to vector<136x136xf32>
    %cst_60 = arith.constant dense<0.000000e+00> : vector<32x136xf32>
    %46 = tpu.matmul %36, %45, %cst_60 {dimension_numbers = #tpu.dot_dimension_numbers<[1], [0], [0], [1], [0, 0, 1, 1], [], []>} : vector<32x136xf32>, vector<136x136xf32>, vector<32x136xf32> -> vector<32x136xf32>
    %47 = arith.addf %43, %46 : vector<32x136xf32>
    %c0_61 = arith.constant 0 : index
    %c0_62 = arith.constant 0 : index
    %48 = vector.load %arg5[%c0_61, %c0_62] : memref<1x136xf32, #tpu.memory_space<vmem>>, vector<1x136xf32>
    %49 = vector.broadcast %48 : vector<1x136xf32> to vector<32x136xf32>
    %50 = arith.addf %47, %49 : vector<32x136xf32>
    %cst_63 = arith.constant 0.000000e+00 : f32
    %51 = vector.broadcast %cst_63 : f32 to vector<32x136xf32>
    %52 = arith.maximumf %50, %51 : vector<32x136xf32>
    %c1_64 = arith.constant 1 : index
    %c0_65 = arith.constant 0 : index
    %53 = vector.load %arg11[%c1_64, %c0_65] : memref<34x136xf32, #tpu.memory_space<vmem>>, vector<32x136xf32>
    tpu.vector_store %arg11[%c1_64, %c0_65], %52 {strides = array<i32>} : memref<34x136xf32, #tpu.memory_space<vmem>>, vector<32x136xf32>,
    %c0_66 = arith.constant 0 : index
    %c0_67 = arith.constant 0 : index
    %54 = vector.load %arg7[%c0_66, %c0_67] : memref<136x128xf32, #tpu.memory_space<vmem>>, vector<136x128xf32>
    %cst_68 = arith.constant dense<0.000000e+00> : vector<32x128xf32>
    %55 = tpu.matmul %35, %54, %cst_68 {dimension_numbers = #tpu.dot_dimension_numbers<[1], [0], [0], [1], [0, 0, 1, 1], [], []>} : vector<32x136xf32>, vector<136x128xf32>, vector<32x128xf32> -> vector<32x128xf32>
    %c0_69 = arith.constant 0 : index
    %c0_70 = arith.constant 0 : index
    %56 = vector.load %arg11[%c0_69, %c0_70] : memref<34x136xf32, #tpu.memory_space<vmem>>, vector<32x136xf32>
    %c0_71 = arith.constant 0 : index
    %c0_72 = arith.constant 0 : index
    %c0_73 = arith.constant 0 : index
    %57 = vector.load %arg6[%c0_71, %c0_72, %c0_73] : memref<3x136x128xf32, #tpu.memory_space<vmem>>, vector<1x136x128xf32>
    %58 = vector.shape_cast %57 : vector<1x136x128xf32> to vector<136x128xf32>
    %cst_74 = arith.constant dense<0.000000e+00> : vector<32x128xf32>
    %59 = tpu.matmul %56, %58, %cst_74 {dimension_numbers = #tpu.dot_dimension_numbers<[1], [0], [0], [1], [0, 0, 1, 1], [], []>} : vector<32x136xf32>, vector<136x128xf32>, vector<32x128xf32> -> vector<32x128xf32>
    %60 = arith.addf %55, %59 : vector<32x128xf32>
    %c1_75 = arith.constant 1 : index
    %c0_76 = arith.constant 0 : index
    %61 = vector.load %arg11[%c1_75, %c0_76] : memref<34x136xf32, #tpu.memory_space<vmem>>, vector<32x136xf32>
    %c1_77 = arith.constant 1 : index
    %c0_78 = arith.constant 0 : index
    %c0_79 = arith.constant 0 : index
    %62 = vector.load %arg6[%c1_77, %c0_78, %c0_79] : memref<3x136x128xf32, #tpu.memory_space<vmem>>, vector<1x136x128xf32>
    %63 = vector.shape_cast %62 : vector<1x136x128xf32> to vector<136x128xf32>
    %cst_80 = arith.constant dense<0.000000e+00> : vector<32x128xf32>
    %64 = tpu.matmul %61, %63, %cst_80 {dimension_numbers = #tpu.dot_dimension_numbers<[1], [0], [0], [1], [0, 0, 1, 1], [], []>} : vector<32x136xf32>, vector<136x128xf32>, vector<32x128xf32> -> vector<32x128xf32>
    %65 = arith.addf %60, %64 : vector<32x128xf32>
    %c2_81 = arith.constant 2 : index
    %c0_82 = arith.constant 0 : index
    %66 = vector.load %arg11[%c2_81, %c0_82] : memref<34x136xf32, #tpu.memory_space<vmem>>, vector<32x136xf32>
    %c2_83 = arith.constant 2 : index
    %c0_84 = arith.constant 0 : index
    %c0_85 = arith.constant 0 : index
    %67 = vector.load %arg6[%c2_83, %c0_84, %c0_85] : memref<3x136x128xf32, #tpu.memory_space<vmem>>, vector<1x136x128xf32>
    %68 = vector.shape_cast %67 : vector<1x136x128xf32> to vector<136x128xf32>
    %cst_86 = arith.constant dense<0.000000e+00> : vector<32x128xf32>
    %69 = tpu.matmul %66, %68, %cst_86 {dimension_numbers = #tpu.dot_dimension_numbers<[1], [0], [0], [1], [0, 0, 1, 1], [], []>} : vector<32x136xf32>, vector<136x128xf32>, vector<32x128xf32> -> vector<32x128xf32>
    %70 = arith.addf %65, %69 : vector<32x128xf32>
    %c0_87 = arith.constant 0 : index
    %c0_88 = arith.constant 0 : index
    %71 = vector.load %arg8[%c0_87, %c0_88] : memref<1x128xf32, #tpu.memory_space<vmem>>, vector<1x128xf32>
    %72 = vector.broadcast %71 : vector<1x128xf32> to vector<32x128xf32>
    %73 = arith.addf %70, %72 : vector<32x128xf32>
    %cst_89 = arith.constant 0.000000e+00 : f32
    %74 = vector.broadcast %cst_89 : f32 to vector<32x128xf32>
    %75 = arith.maximumf %73, %74 : vector<32x128xf32>
    %76 = vector.extract_strided_slice %75 {offsets = [0, 0], sizes = [32, 32], strides = [1, 1]} : vector<32x128xf32> to vector<32x32xf32>
    %c0_90 = arith.constant 0 : index
    %c0_91 = arith.constant 0 : index
    %c0_92 = arith.constant 0 : index
    %c0_93 = arith.constant 0 : index
    %77 = vector.load %arg9[%c0_90, %c0_91, %c0_92, %c0_93] : memref<1x4x32x32xf32, #tpu.memory_space<vmem>>, vector<1x1x32x32xf32>
    %78 = vector.shape_cast %77 : vector<1x1x32x32xf32> to vector<32x32xf32>
    %79 = vector.shape_cast %76 : vector<32x32xf32> to vector<1x1x32x32xf32>
    tpu.vector_store %arg9[%c0_90, %c0_91, %c0_92, %c0_93], %79 {strides = array<i32>} : memref<1x4x32x32xf32, #tpu.memory_space<vmem>>, vector<1x1x32x32xf32>,
    %80 = vector.extract_strided_slice %75 {offsets = [0, 32], sizes = [32, 32], strides = [1, 1]} : vector<32x128xf32> to vector<32x32xf32>
    %c0_94 = arith.constant 0 : index
    %c1_95 = arith.constant 1 : index
    %c0_96 = arith.constant 0 : index
    %c0_97 = arith.constant 0 : index
    %81 = vector.load %arg9[%c0_94, %c1_95, %c0_96, %c0_97] : memref<1x4x32x32xf32, #tpu.memory_space<vmem>>, vector<1x1x32x32xf32>
    %82 = vector.shape_cast %81 : vector<1x1x32x32xf32> to vector<32x32xf32>
    %83 = vector.shape_cast %80 : vector<32x32xf32> to vector<1x1x32x32xf32>
    tpu.vector_store %arg9[%c0_94, %c1_95, %c0_96, %c0_97], %83 {strides = array<i32>} : memref<1x4x32x32xf32, #tpu.memory_space<vmem>>, vector<1x1x32x32xf32>,
    %84 = vector.extract_strided_slice %75 {offsets = [0, 64], sizes = [32, 32], strides = [1, 1]} : vector<32x128xf32> to vector<32x32xf32>
    %c0_98 = arith.constant 0 : index
    %c2_99 = arith.constant 2 : index
    %c0_100 = arith.constant 0 : index
    %c0_101 = arith.constant 0 : index
    %85 = vector.load %arg9[%c0_98, %c2_99, %c0_100, %c0_101] : memref<1x4x32x32xf32, #tpu.memory_space<vmem>>, vector<1x1x32x32xf32>
    %86 = vector.shape_cast %85 : vector<1x1x32x32xf32> to vector<32x32xf32>
    %87 = vector.shape_cast %84 : vector<32x32xf32> to vector<1x1x32x32xf32>
    tpu.vector_store %arg9[%c0_98, %c2_99, %c0_100, %c0_101], %87 {strides = array<i32>} : memref<1x4x32x32xf32, #tpu.memory_space<vmem>>, vector<1x1x32x32xf32>,
    %88 = vector.extract_strided_slice %75 {offsets = [0, 96], sizes = [32, 32], strides = [1, 1]} : vector<32x128xf32> to vector<32x32xf32>
    %c0_102 = arith.constant 0 : index
    %c3_103 = arith.constant 3 : index
    %c0_104 = arith.constant 0 : index
    %c0_105 = arith.constant 0 : index
    %89 = vector.load %arg9[%c0_102, %c3_103, %c0_104, %c0_105] : memref<1x4x32x32xf32, #tpu.memory_space<vmem>>, vector<1x1x32x32xf32>
    %90 = vector.shape_cast %89 : vector<1x1x32x32xf32> to vector<32x32xf32>
    %91 = vector.shape_cast %88 : vector<32x32xf32> to vector<1x1x32x32xf32>
    tpu.vector_store %arg9[%c0_102, %c3_103, %c0_104, %c0_105], %91 {strides = array<i32>} : memref<1x4x32x32xf32, #tpu.memory_space<vmem>>, vector<1x1x32x32xf32>,
    return
  }
  func.func @transform_0(%arg0: i32) -> (i32, i32, i32, i32) {
    %c0_i32 = arith.constant 0 : i32
    %c0_i32_0 = arith.constant 0 : i32
    %c0_i32_1 = arith.constant 0 : i32
    %c0_i32_2 = arith.constant 0 : i32
    return %arg0, %c0_i32, %c0_i32_0, %c0_i32_1 : i32, i32, i32, i32
  }
  func.func @transform_1(%arg0: i32) -> (i32, i32) {
    %c0_i32 = arith.constant 0 : i32
    %c0_i32_0 = arith.constant 0 : i32
    %c0_i32_1 = arith.constant 0 : i32
    return %c0_i32, %c0_i32_0 : i32, i32
  }
  func.func @transform_2(%arg0: i32) -> (i32, i32, i32) {
    %c0_i32 = arith.constant 0 : i32
    %c0_i32_0 = arith.constant 0 : i32
    %c0_i32_1 = arith.constant 0 : i32
    %c0_i32_2 = arith.constant 0 : i32
    return %c0_i32, %c0_i32_0, %c0_i32_1 : i32, i32, i32
  }
  func.func @transform_3(%arg0: i32) -> (i32, i32, i32) {
    %c0_i32 = arith.constant 0 : i32
    %c0_i32_0 = arith.constant 0 : i32
    %c0_i32_1 = arith.constant 0 : i32
    %c0_i32_2 = arith.constant 0 : i32
    return %c0_i32, %c0_i32_0, %c0_i32_1 : i32, i32, i32
  }
  func.func @transform_4(%arg0: i32) -> (i32, i32) {
    %c0_i32 = arith.constant 0 : i32
    %c0_i32_0 = arith.constant 0 : i32
    %c0_i32_1 = arith.constant 0 : i32
    return %c0_i32, %c0_i32_0 : i32, i32
  }
  func.func @transform_5(%arg0: i32) -> (i32, i32, i32) {
    %c0_i32 = arith.constant 0 : i32
    %c0_i32_0 = arith.constant 0 : i32
    %c0_i32_1 = arith.constant 0 : i32
    %c0_i32_2 = arith.constant 0 : i32
    return %c0_i32, %c0_i32_0, %c0_i32_1 : i32, i32, i32
  }
  func.func @transform_6(%arg0: i32) -> (i32, i32) {
    %c0_i32 = arith.constant 0 : i32
    %c0_i32_0 = arith.constant 0 : i32
    %c0_i32_1 = arith.constant 0 : i32
    return %c0_i32, %c0_i32_0 : i32, i32
  }
  func.func @transform_7(%arg0: i32) -> (i32, i32) {
    %c0_i32 = arith.constant 0 : i32
    %c0_i32_0 = arith.constant 0 : i32
    %c0_i32_1 = arith.constant 0 : i32
    return %c0_i32, %c0_i32_0 : i32, i32
  }
  func.func @transform_8(%arg0: i32) -> (i32, i32, i32, i32) {
    %c0_i32 = arith.constant 0 : i32
    %c0_i32_0 = arith.constant 0 : i32
    %c0_i32_1 = arith.constant 0 : i32
    %c0_i32_2 = arith.constant 0 : i32
    return %arg0, %c0_i32, %c0_i32_0, %c0_i32_1 : i32, i32, i32, i32
  }
}

</mosaic_0001>

<llo_original>
// kernel: tpu_custom_call.1
$region0: #{tpu_custom_call.1}
  #allocation0 [shape = 'u32[]', space=smem, size = 0x4, offset = 0x4, fixed_abs, tag = 'smem constant byte address 0x4 - core index']
  #allocation1 [shape = 'u32[144,128]{1,0:T(1,128)}', space=vmem, size = 0x12000, scoped, tag = 'internal scratch']
  #allocation2 [shape = 'f32[34,136]{1,0:T(8,128)}', space=vmem, size = 0xa000, scoped, tag = 'scratch operand']
  #allocation3 [shape = 'f32[34,136]{1,0:T(8,128)}', space=vmem, size = 0xa000, scoped, tag = 'scratch operand']
  %s0 = inlined_call_operand.hbm [shape: f32[2,4,16,16], index: 0, kind: input, shape index: {}]
  %s1 = inlined_call_operand.vmem [shape: f32[32,16], index: 1, kind: input, shape index: {}]
  %s2 = inlined_call_operand.hbm [shape: f32[4,16,136], index: 2, kind: input, shape index: {}]
  %s3 = inlined_call_operand.hbm [shape: f32[3,136,136], index: 3, kind: input, shape index: {}]
  %s4 = inlined_call_operand.vmem [shape: f32[1,136], index: 4, kind: input, shape index: {}]
  %s5 = inlined_call_operand.hbm [shape: f32[3,136,128], index: 5, kind: input, shape index: {}]
  %s6 = inlined_call_operand.hbm [shape: f32[136,128], index: 6, kind: input, shape index: {}]
  %s7 = inlined_call_operand.vmem [shape: f32[1,128], index: 7, kind: input, shape index: {}]
  %s8 = inlined_call_operand.hbm [shape: f32[2,4,32,32], index: 8, kind: output, shape index: {}]
  %s9 = sld [smem:[#allocation0]]
  $region85: #{tpu_custom_call.1} parent=0
    _
  %s11 = ssub.s32 1, %s9
  %s12 = scalar_select 0, %s11, %s9
  $region1: #{tpu_custom_call.1} parent=0
    #allocation4 [shape = 'u8[65536]{0}', space=vmem, size = 0x10000, scoped, tag = 'input window, operand 0']
    #allocation5 [shape = 's32[2]{0}', space=sflag, size = 0x8, scoped, tag = 'scoped memory for tpu_custom_call.1']
    #allocation6 [shape = 's32[2]{0}', space=sflag, size = 0x8, scoped, tag = 'scoped memory for tpu_custom_call.1']
    #allocation7 [shape = 'u8[65536]{0}', space=vmem, size = 0x10000, scoped, tag = 'input window, operand 2, single buffered']
    #allocation8 [shape = 's32[1]{0}', space=sflag, size = 0x4, scoped, tag = 'scoped memory for tpu_custom_call.1']
    #allocation9 [shape = 'u8[417792]{0}', space=vmem, size = 0x66000, scoped, tag = 'input window, operand 3, single buffered']
    #allocation10 [shape = 'u8[208896]{0}', space=vmem, size = 0x33000, scoped, tag = 'input window, operand 5, single buffered']
    #allocation11 [shape = 's32[1]{0}', space=sflag, size = 0x4, scoped, tag = 'scoped memory for tpu_custom_call.1']
    #allocation12 [shape = 'u8[69632]{0}', space=vmem, size = 0x11000, scoped, tag = 'input window, operand 6, single buffered']
    #allocation13 [shape = 'u8[131072]{0}', space=vmem, size = 0x20000, scoped, tag = 'output window, operand 0']
    %13 = vsyncpa [#allocation5], 0
    %s14 = scalar_lea.sflag [#allocation5], 1
    %15 = vsyncpa %s14, 0
    %16 = vsyncpa [#allocation8], 0
    %17 = vsyncpa [#allocation11], 0
    %18 = vsyncpa [#allocation6], 0
    %s19 = scalar_lea.sflag [#allocation6], 1
    %20 = vsyncpa %s19, 0
    loop: start=0, step=1, limit=4
    $region2: #{tpu_custom_call.1} parent=1 // loop_pre_header
      _
    $region3: #{tpu_custom_call.1} parent=1 // loop_header
      %s22 = sphi 0, %s26
      %p23 = scmp.ge.s32.totalorder %s22, 4
      %s32 = sphi 0, %s34
      %s35 = sphi 0, %s32
      %s36 = sphi 0, %s35
      %s52 = sphi 0, %s36
      %s56 = sphi 0, %s56
      %s58 = sphi 0, %s56
      %s59 = sphi 0, %s58
      %s73 = sphi 0, %s59
      %s77 = sphi 0, %s77
      %s79 = sphi 0, %s77
      %s80 = sphi 0, %s79
      %s94 = sphi 0, %s80
      %s98 = sphi 0, %s98
      %s100 = sphi 0, %s98
      %s101 = sphi 0, %s100
      %s115 = sphi 0, %s101
      %s119 = sphi 0, %s119
      %s121 = sphi 0, %s119
      %s122 = sphi 0, %s121
      %s136 = sphi 0, %s122
      %s140 = sphi 0, %s140
      %s142 = sphi 0, %s140
      %s143 = sphi 0, %s142
      %s157 = sphi 0, %s143
      %s161 = sphi 0, %s161
      %s163 = sphi 0, %s161
      %s164 = sphi 0, %s163
      %s178 = sphi 0, %s164
      %s182 = sphi 0, %s182
      %s184 = sphi 0, %s182
      %s185 = sphi 0, %s184
      %s199 = sphi 0, %s185
      %s205 = sphi 0, %s207
      %s208 = sphi 0, %s205
      %s209 = sphi 0, %s208
      %s225 = sphi 0, %s209
    $region4: #{tpu_custom_call.1} parent=1 // loop_header_branch
      %25 = sbr.rel (%p23) target = $region8
    $region5: #{tpu_custom_call.1} parent=1 // loop_body
      %s27 = ssub.s32 %s22, 1
      %s28 = ssub.s32 %s22, 2
      %s29 = sadd.s32 %s22, 1
      %s30 = ssub.s32 %s22, %s29
      %p31 = scmp.eq.s32.totalorder %s30, 0
      %s33 = sadd.s32 %s32, 1
      %s34 = scalar_select %p31, %s32, %s33
      %p37 = pneg %p31
      %p38 = scmp.eq.s32.totalorder %s22, 1
      %p39 = por %p37, %p38
      %p40 = scmp.ne.s32.totalorder %s32, %s35
      %p41 = scmp.eq.s32.totalorder %s22, 0
      %p42 = por %p40, %p41
      %p43 = scmp.ne.s32.totalorder %s32, %s35
      %p44 = scmp.eq.s32.totalorder %s27, 1
      %p45 = por %p43, %p44
      %p46 = scmp.ne.s32.totalorder %s35, %s36
      %p47 = scmp.eq.s32.totalorder %s27, 0
      %p48 = por %p46, %p47
      %p49 = scmp.ne.s32.totalorder %s35, %s36
      %p50 = scmp.eq.s32.totalorder %s28, 1
      %p51 = por %p49, %p50
      %p53 = scmp.ne.s32.totalorder %s36, %s52
      %p54 = scmp.eq.s32.totalorder %s28, 0
      %p55 = por %p53, %p54
      %s57 = sadd.s32 %s56, 1
      %p60 = scmp.eq.s32.totalorder %s22, 1
      %p61 = scmp.ne.s32.totalorder %s56, %s58
      %p62 = scmp.eq.s32.totalorder %s22, 0
      %p63 = por %p61, %p62
      %p64 = scmp.ne.s32.totalorder %s56, %s58
      %p65 = scmp.eq.s32.totalorder %s27, 1
      %p66 = por %p64, %p65
      %p67 = scmp.ne.s32.totalorder %s58, %s59
      %p68 = scmp.eq.s32.totalorder %s27, 0
      %p69 = por %p67, %p68
      %p70 = scmp.ne.s32.totalorder %s58, %s59
      %p71 = scmp.eq.s32.totalorder %s28, 1
      %p72 = por %p70, %p71
      %p74 = scmp.ne.s32.totalorder %s59, %s73
      %p75 = scmp.eq.s32.totalorder %s28, 0
      %p76 = por %p74, %p75
      %s78 = sadd.s32 %s77, 1
      %p81 = scmp.eq.s32.totalorder %s22, 1
      %p82 = scmp.ne.s32.totalorder %s77, %s79
      %p83 = scmp.eq.s32.totalorder %s22, 0
      %p84 = por %p82, %p83
      %p85 = scmp.ne.s32.totalorder %s77, %s79
      %p86 = scmp.eq.s32.totalorder %s27, 1
      %p87 = por %p85, %p86
      %p88 = scmp.ne.s32.totalorder %s79, %s80
      %p89 = scmp.eq.s32.totalorder %s27, 0
      %p90 = por %p88, %p89
      %p91 = scmp.ne.s32.totalorder %s79, %s80
      %p92 = scmp.eq.s32.totalorder %s28, 1
      %p93 = por %p91, %p92
      %p95 = scmp.ne.s32.totalorder %s80, %s94
      %p96 = scmp.eq.s32.totalorder %s28, 0
      %p97 = por %p95, %p96
      %s99 = sadd.s32 %s98, 1
      %p102 = scmp.eq.s32.totalorder %s22, 1
      %p103 = scmp.ne.s32.totalorder %s98, %s100
      %p104 = scmp.eq.s32.totalorder %s22, 0
      %p105 = por %p103, %p104
      %p106 = scmp.ne.s32.totalorder %s98, %s100
      %p107 = scmp.eq.s32.totalorder %s27, 1
      %p108 = por %p106, %p107
      %p109 = scmp.ne.s32.totalorder %s100, %s101
      %p110 = scmp.eq.s32.totalorder %s27, 0
      %p111 = por %p109, %p110
      %p112 = scmp.ne.s32.totalorder %s100, %s101
      %p113 = scmp.eq.s32.totalorder %s28, 1
      %p114 = por %p112, %p113
      %p116 = scmp.ne.s32.totalorder %s101, %s115
      %p117 = scmp.eq.s32.totalorder %s28, 0
      %p118 = por %p116, %p117
      %s120 = sadd.s32 %s119, 1
      %p123 = scmp.eq.s32.totalorder %s22, 1
      %p124 = scmp.ne.s32.totalorder %s119, %s121
      %p125 = scmp.eq.s32.totalorder %s22, 0
      %p126 = por %p124, %p125
      %p127 = scmp.ne.s32.totalorder %s119, %s121
      %p128 = scmp.eq.s32.totalorder %s27, 1
      %p129 = por %p127, %p128
      %p130 = scmp.ne.s32.totalorder %s121, %s122
      %p131 = scmp.eq.s32.totalorder %s27, 0
      %p132 = por %p130, %p131
      %p133 = scmp.ne.s32.totalorder %s121, %s122
      %p134 = scmp.eq.s32.totalorder %s28, 1
      %p135 = por %p133, %p134
      %p137 = scmp.ne.s32.totalorder %s122, %s136
      %p138 = scmp.eq.s32.totalorder %s28, 0
      %p139 = por %p137, %p138
      %s141 = sadd.s32 %s140, 1
      %p144 = scmp.eq.s32.totalorder %s22, 1
      %p145 = scmp.ne.s32.totalorder %s140, %s142
      %p146 = scmp.eq.s32.totalorder %s22, 0
      %p147 = por %p145, %p146
      %p148 = scmp.ne.s32.totalorder %s140, %s142
      %p149 = scmp.eq.s32.totalorder %s27, 1
      %p150 = por %p148, %p149
      %p151 = scmp.ne.s32.totalorder %s142, %s143
      %p152 = scmp.eq.s32.totalorder %s27, 0
      %p153 = por %p151, %p152
      %p154 = scmp.ne.s32.totalorder %s142, %s143
      %p155 = scmp.eq.s32.totalorder %s28, 1
      %p156 = por %p154, %p155
      %p158 = scmp.ne.s32.totalorder %s143, %s157
      %p159 = scmp.eq.s32.totalorder %s28, 0
      %p160 = por %p158, %p159
      %s162 = sadd.s32 %s161, 1
      %p165 = scmp.eq.s32.totalorder %s22, 1
      %p166 = scmp.ne.s32.totalorder %s161, %s163
      %p167 = scmp.eq.s32.totalorder %s22, 0
      %p168 = por %p166, %p167
      %p169 = scmp.ne.s32.totalorder %s161, %s163
      %p170 = scmp.eq.s32.totalorder %s27, 1
      %p171 = por %p169, %p170
      %p172 = scmp.ne.s32.totalorder %s163, %s164
      %p173 = scmp.eq.s32.totalorder %s27, 0
      %p174 = por %p172, %p173
      %p175 = scmp.ne.s32.totalorder %s163, %s164
      %p176 = scmp.eq.s32.totalorder %s28, 1
      %p177 = por %p175, %p176
      %p179 = scmp.ne.s32.totalorder %s164, %s178
      %p180 = scmp.eq.s32.totalorder %s28, 0
      %p181 = por %p179, %p180
      %s183 = sadd.s32 %s182, 1
      %p186 = scmp.eq.s32.totalorder %s22, 1
      %p187 = scmp.ne.s32.totalorder %s182, %s184
      %p188 = scmp.eq.s32.totalorder %s22, 0
      %p189 = por %p187, %p188
      %p190 = scmp.ne.s32.totalorder %s182, %s184
      %p191 = scmp.eq.s32.totalorder %s27, 1
      %p192 = por %p190, %p191
      %p193 = scmp.ne.s32.totalorder %s184, %s185
      %p194 = scmp.eq.s32.totalorder %s27, 0
      %p195 = por %p193, %p194
      %p196 = scmp.ne.s32.totalorder %s184, %s185
      %p197 = scmp.eq.s32.totalorder %s28, 1
      %p198 = por %p196, %p197
      %p200 = scmp.ne.s32.totalorder %s185, %s199
      %p201 = scmp.eq.s32.totalorder %s28, 0
      %p202 = por %p200, %p201
      %s203 = ssub.s32 %s22, %s29
      %p204 = scmp.eq.s32.totalorder %s203, 0
      %s206 = sadd.s32 %s205, 1
      %s207 = scalar_select %p204, %s205, %s206
      %p210 = pneg %p204
      %p211 = scmp.eq.s32.totalorder %s22, 1
      %p212 = por %p210, %p211
      %p213 = scmp.ne.s32.totalorder %s205, %s208
      %p214 = scmp.eq.s32.totalorder %s22, 0
      %p215 = por %p213, %p214
      %p216 = scmp.ne.s32.totalorder %s205, %s208
      %p217 = scmp.eq.s32.totalorder %s27, 1
      %p218 = por %p216, %p217
      %p219 = scmp.ne.s32.totalorder %s208, %s209
      %p220 = scmp.eq.s32.totalorder %s27, 0
      %p221 = por %p219, %p220
      %p222 = scmp.ne.s32.totalorder %s208, %s209
      %p223 = scmp.eq.s32.totalorder %s28, 1
      %p224 = por %p222, %p223
      %p226 = scmp.ne.s32.totalorder %s209, %s225
      %p227 = scmp.eq.s32.totalorder %s28, 0
      %p228 = por %p226, %p227
      %p229 = scmp.le.s32.totalorder 1, %s22
      %p230 = scmp.lt.s32.totalorder %s22, 3
      %p231 = pnand %p229, %p230
      %p232 = pneg %p231
      // Predicated region
      $region9: #{tpu_custom_call.1} parent=5 // pred_check
        _
      $region10: #{tpu_custom_call.1} parent=5 // pred_check_branch
        %234 = sbr.rel (%p231) target = $region12
      $region11: #{tpu_custom_call.1} parent=5 // pred_region
        %s235 = ssub.s32 %s22, 1
        // Predicated region
        $region13: #{tpu_custom_call.1} parent=11 // pred_check
          %p236 = pneg %p69
        $region14: #{tpu_custom_call.1} parent=11 // pred_check_branch
          %238 = sbr.rel (%p236) target = $region16
        $region15: #{tpu_custom_call.1} parent=11 // pred_region
          _
        $region16: #{tpu_custom_call.1} parent=11 // pred_fallthru
          _
        // Predicated region
        $region17: #{tpu_custom_call.1} parent=11 // pred_check
          %p239 = pneg %p90
        $region18: #{tpu_custom_call.1} parent=11 // pred_check_branch
          %241 = sbr.rel (%p239) target = $region20
        $region19: #{tpu_custom_call.1} parent=11 // pred_region
          %s243 = ssub.s32 2048, 2048
          %244 = vsyncadd [#allocation8], %s243
          %s245 = sshll.u32 [#allocation7], 4
          %s246 = int_to_ptr.vmem [resolvable:$true] %s245
          %251 = dma.hbm_to_vmem [thread:$0]  %s2, 2048, %s246, [#allocation8], 256, 256, 16
        $region20: #{tpu_custom_call.1} parent=11 // pred_fallthru
          _
        // Predicated region
        $region21: #{tpu_custom_call.1} parent=11 // pred_check
          %p252 = pneg %p111
        $region22: #{tpu_custom_call.1} parent=11 // pred_check_branch
          %254 = sbr.rel (%p252) target = $region24
        $region23: #{tpu_custom_call.1} parent=11 // pred_region
          %s256 = ssub.s32 13056, 13056
          %257 = vsyncadd [#allocation8], %s256
          %s258 = sshll.u32 [#allocation9], 4
          %s259 = int_to_ptr.vmem [resolvable:$true] %s258
          %264 = dma.hbm_to_vmem [thread:$0]  %s3, 13056, %s259, [#allocation8], 256, 256, 16
        $region24: #{tpu_custom_call.1} parent=11 // pred_fallthru
          _
        // Predicated region
        $region25: #{tpu_custom_call.1} parent=11 // pred_check
          %p265 = pneg %p132
        $region26: #{tpu_custom_call.1} parent=11 // pred_check_branch
          %267 = sbr.rel (%p265) target = $region28
        $region27: #{tpu_custom_call.1} parent=11 // pred_region
          _
        $region28: #{tpu_custom_call.1} parent=11 // pred_fallthru
          _
        // Predicated region
        $region29: #{tpu_custom_call.1} parent=11 // pred_check
          %p268 = pneg %p153
        $region30: #{tpu_custom_call.1} parent=11 // pred_check_branch
          %270 = sbr.rel (%p268) target = $region32
        $region31: #{tpu_custom_call.1} parent=11 // pred_region
          %s272 = ssub.s32 6528, 6528
          %273 = vsyncadd [#allocation11], %s272
          %s274 = sshll.u32 [#allocation10], 4
          %s275 = int_to_ptr.vmem [resolvable:$true] %s274
          %280 = dma.hbm_to_vmem [thread:$0]  %s5, 6528, %s275, [#allocation11], 128, 128, 8
        $region32: #{tpu_custom_call.1} parent=11 // pred_fallthru
          _
        // Predicated region
        $region33: #{tpu_custom_call.1} parent=11 // pred_check
          %p281 = pneg %p174
        $region34: #{tpu_custom_call.1} parent=11 // pred_check_branch
          %283 = sbr.rel (%p281) target = $region36
        $region35: #{tpu_custom_call.1} parent=11 // pred_region
          %s285 = ssub.s32 2176, 2176
          %286 = vsyncadd [#allocation11], %s285
          %s287 = sshll.u32 [#allocation12], 4
          %s288 = int_to_ptr.vmem [resolvable:$true] %s287
          %293 = dma.hbm_to_vmem [thread:$0]  %s6, 2176, %s288, [#allocation11], 128, 128, 8
        $region36: #{tpu_custom_call.1} parent=11 // pred_fallthru
          _
        // Predicated region
        $region37: #{tpu_custom_call.1} parent=11 // pred_check
          %p294 = pneg %p195
        $region38: #{tpu_custom_call.1} parent=11 // pred_check_branch
          %296 = sbr.rel (%p294) target = $region40
        $region39: #{tpu_custom_call.1} parent=11 // pred_region
          _
        $region40: #{tpu_custom_call.1} parent=11 // pred_fallthru
          _
      $region12: #{tpu_custom_call.1} parent=5 // pred_fallthru
        _
      %p297 = scmp.lt.s32.totalorder %s22, 2
      // Predicated region
      $region41: #{tpu_custom_call.1} parent=5 // pred_check
        %p298 = pneg %p297
      $region42: #{tpu_custom_call.1} parent=5 // pred_check_branch
        %300 = sbr.rel (%p298) target = $region44
      $region43: #{tpu_custom_call.1} parent=5 // pred_region
        // Predicated region
        $region45: #{tpu_custom_call.1} parent=43 // pred_check
          %p301 = pneg %p42
        $region46: #{tpu_custom_call.1} parent=43 // pred_check_branch
          %303 = sbr.rel (%p301) target = $region48
        $region47: #{tpu_custom_call.1} parent=43 // pred_region
          %s304 = sand.u32 %s32, 1
          %s305 = scalar_lea.sflag [#allocation5], %s304
          %s306 = sand.u32 %s32, 1
          %s307 = smul.addr %s306, 64
          %s308 = scalar_lea.vmem [#allocation4], %s307
          %s310 = ssub.s32 1024, 1024
          %311 = vsyncadd %s305, %s310
          %s312 = smul.addr %s22, 8
          %s313 = smul.addr %s312, 128
          %s314 = scalar_lea.hbm %s0, %s313
          %s315 = sshll.u32 %s308, 4
          %s316 = int_to_ptr.vmem [resolvable:$true] %s315
          %321 = dma.hbm_to_vmem [thread:$0]  %s314, 1024, %s316, %s305, 128, 128, 8
        $region48: #{tpu_custom_call.1} parent=43 // pred_fallthru
          _
      $region44: #{tpu_custom_call.1} parent=5 // pred_fallthru
        _
      %p322 = scmp.le.s32.totalorder 1, %s22
      %p323 = scmp.lt.s32.totalorder %s22, 3
      %p324 = pnand %p322, %p323
      %p325 = pneg %p324
      // Predicated region
      $region49: #{tpu_custom_call.1} parent=5 // pred_check
        _
      $region50: #{tpu_custom_call.1} parent=5 // pred_check_branch
        %327 = sbr.rel (%p324) target = $region52
      $region51: #{tpu_custom_call.1} parent=5 // pred_region
        %s328 = ssub.s32 %s22, 1
        %s329 = sand.u32 %s35, 1
        %s330 = scalar_lea.sflag [#allocation5], %s329
        %s331 = sand.u32 %s35, 1
        %s332 = smul.addr %s331, 64
        %s333 = scalar_lea.vmem [#allocation4], %s332
        // Predicated region
        $region53: #{tpu_custom_call.1} parent=51 // pred_check
          %p334 = pneg %p48
        $region54: #{tpu_custom_call.1} parent=51 // pred_check_branch
          %336 = sbr.rel (%p334) target = $region56
        $region55: #{tpu_custom_call.1} parent=51 // pred_region
          %337 = dma.done %s330, 1024
        $region56: #{tpu_custom_call.1} parent=51 // pred_fallthru
          _
        // Predicated region
        $region57: #{tpu_custom_call.1} parent=51 // pred_check
          %p338 = pneg %p90
        $region58: #{tpu_custom_call.1} parent=51 // pred_check_branch
          %340 = sbr.rel (%p338) target = $region60
        $region59: #{tpu_custom_call.1} parent=51 // pred_region
          %341 = dma.done [#allocation8], 2048
        $region60: #{tpu_custom_call.1} parent=51 // pred_fallthru
          _
        // Predicated region
        $region61: #{tpu_custom_call.1} parent=51 // pred_check
          %p342 = pneg %p111
        $region62: #{tpu_custom_call.1} parent=51 // pred_check_branch
          %344 = sbr.rel (%p342) target = $region64
        $region63: #{tpu_custom_call.1} parent=51 // pred_region
          %345 = dma.done [#allocation8], 13056
        $region64: #{tpu_custom_call.1} parent=51 // pred_fallthru
          _
        // Predicated region
        $region65: #{tpu_custom_call.1} parent=51 // pred_check
          %p346 = pneg %p153
        $region66: #{tpu_custom_call.1} parent=51 // pred_check_branch
          %348 = sbr.rel (%p346) target = $region68
        $region67: #{tpu_custom_call.1} parent=51 // pred_region
          %349 = dma.done [#allocation11], 6528
        $region68: #{tpu_custom_call.1} parent=51 // pred_fallthru
          _
        // Predicated region
        $region69: #{tpu_custom_call.1} parent=51 // pred_check
          %p350 = pneg %p174
        $region70: #{tpu_custom_call.1} parent=51 // pred_check_branch
          %352 = sbr.rel (%p350) target = $region72
        $region71: #{tpu_custom_call.1} parent=51 // pred_region
          %353 = dma.done [#allocation11], 2176
        $region72: #{tpu_custom_call.1} parent=51 // pred_fallthru
          _
        %s354 = sand.u32 %s35, 1
        %s355 = scalar_lea.sflag [#allocation5], %s354
        %s356 = sand.u32 %s35, 1
        %s357 = smul.addr %s356, 64
        %s358 = scalar_lea.vmem [#allocation4], %s357
        %p359 = pneg %p48
        %p360 = pneg %p45
        %p361 = pneg %p69
        %p362 = pneg %p66
        %p363 = pneg %p90
        %p364 = pneg %p87
        %p365 = pneg %p111
        %p366 = pneg %p108
        %p367 = pneg %p132
        %p368 = pneg %p129
        %p369 = pneg %p153
        %p370 = pneg %p150
        %p371 = pneg %p174
        %p372 = pneg %p171
        %p373 = pneg %p195
        %p374 = pneg %p192
        %p375 = pneg %p221
        %p376 = pneg %p218
        %s377 = sand.u32 %s208, 1
        %s378 = scalar_lea.sflag [#allocation6], %s377
        %s379 = sand.u32 %s208, 1
        %s380 = smul.addr %s379, 128
        %s381 = scalar_lea.vmem [#allocation13], %s380
        %v382 = vlaneseq
        %vm383 = vcmp.ge.s32.totalorder %v382, 0
        %vm384 = vcmp.lt.s32.totalorder %v382, 136
        %vm385 = vmand %vm383, %vm384
        %386 = vst.msk [vmem:[#allocation2] ss:$8 sm:$0x3] %vm385, 0.0
        %387 = vst.msk [vmem:[#allocation2] ss:$8 sm:$0x0] %vm385, 0.0
        %s388 = scalar_lea.vmem [#allocation2], 65
        %389 = vst.msk [vmem:[%s388] ss:$8 sm:$0x3] %vm385, 0.0
        %390 = vst.msk [vmem:[%s388] ss:$8 sm:$0x0] %vm385, 0.0
        %391 = vst.msk [vmem:[#allocation3] ss:$8 sm:$0x3] %vm385, 0.0
        %392 = vst.msk [vmem:[#allocation3] ss:$8 sm:$0x0] %vm385, 0.0
        %s393 = scalar_lea.vmem [#allocation3], 65
        %394 = vst.msk [vmem:[%s393] ss:$8 sm:$0x3] %vm385, 0.0
        %395 = vst.msk [vmem:[%s393] ss:$8 sm:$0x0] %vm385, 0.0
        %v396 = vld [vmem:[%s333] sm:$0xff]
        %v397 = vld [vmem:[%s333 + $0x8] sm:$0xff]
        %v398 = vld [vmem:[#allocation7] sm:$0xff]
        %v399 = vld [vmem:[#allocation7 + $0x8] sm:$0xff]
        %v400 = vld [vmem:[#allocation7 + $0x10] sm:$0xff]
        %v401 = vld [vmem:[#allocation7 + $0x18] sm:$0xff]
        %s402 = scalar_lea.vmem %s333, 16 [#allocation4]
        %v403 = vld [vmem:[%s402] sm:$0xff]
        %v404 = vld [vmem:[%s402 + $0x8] sm:$0xff]
        %s405 = scalar_lea.vmem [#allocation7], 32
        %v406 = vld [vmem:[%s405] sm:$0xff]
        %v407 = vld [vmem:[%s405 + $0x8] sm:$0xff]
        %v408 = vld [vmem:[%s405 + $0x10] sm:$0xff]
        %v409 = vld [vmem:[%s405 + $0x18] sm:$0xff]
        %vm410 = vcmask 130048
        %v412 = vsel %vm410, %v403, 0
        %v415 = vsel %vm410, %v404, 0
        %417 = vmatprep.subr.mxu0 %v407
        %418 = vmatpush1.msra.mxu0 %v406
        %419 = vmatprep.subr.mxu0 %v409
        %420 = vmatpush1.msra.mxu0 %v408
        %421 = vmatprep.subr.mxu0 0.0
        %422 = vmatpush1.msra.mxu0 0.0
        %423 = vmatprep.subr.mxu0 0.0
        %424 = vmatpush1.msra.mxu0 0.0
        %425 = vmatprep.subr.mxu0 0.0
        %426 = vmatpush1.msra.mxu0 0.0
        %427 = vmatprep.subr.mxu0 0.0
        %428 = vmatpush1.msra.mxu0 0.0
        %429 = vmatprep.subr.mxu0 0.0
        %430 = vmatpush1.msra.mxu0 0.0
        %431 = vmatprep.subr.mxu0 0.0
        %432 = vmatpush1.msra.mxu0 0.0
        %433 = vmatprep.subr.mxu0 0.0
        %434 = vmatpush1.msra.mxu0 0.0
        %435 = vmatprep.subr.mxu0 0.0
        %436 = vmatpush1.msra.mxu0 0.0
        %437 = vmatprep.subr.mxu0 0.0
        %438 = vmatpush1.msra.mxu0 0.0
        %439 = vmatprep.subr.mxu0 0.0
        %440 = vmatpush1.msra.mxu0 0.0
        %441 = vmatprep.subr.mxu0 0.0
        %442 = vmatpush1.msra.mxu0 0.0
        %443 = vmatprep.subr.mxu0 0.0
        %444 = vmatpush1.msra.mxu0 0.0
        %445 = vmatprep.subr.mxu0 0.0
        %446 = vmatpush1.msra.mxu0 0.0
        %447 = vmatprep.subr.mxu0 0.0
        %448 = vmatpush1.msra.mxu0 0.0
        %449 = vmatprep.subr.mxu0 0.0
        %450 = vmatpush1.msra.mxu0 0.0
        %451 = vmatprep.subr.mxu0 0.0
        %452 = vmatpush1.msra.mxu0 0.0
        %453 = vmatprep.subr.mxu0 0.0
        %454 = vmatpush1.msra.mxu0 0.0
        %455 = vmatprep.subr.mxu0 0.0
        %456 = vmatpush1.msra.mxu0 0.0
        %457 = vmatprep.subr.mxu0 0.0
        %458 = vmatpush1.msra.mxu0 0.0
        %459 = vmatprep.subr.mxu0 0.0
        %460 = vmatpush1.msra.mxu0 0.0
        %461 = vmatprep.subr.mxu0 0.0
        %462 = vmatpush1.msra.mxu0 0.0
        %463 = vmatprep.subr.mxu0 0.0
        %464 = vmatpush1.msra.mxu0 0.0
        %465 = vmatprep.subr.mxu0 0.0
        %466 = vmatpush1.msra.mxu0 0.0
        %467 = vmatprep.subr.mxu0 0.0
        %468 = vmatpush1.msra.mxu0 0.0
        %469 = vmatprep.subr.mxu0 0.0
        %470 = vmatpush1.msra.mxu0 0.0
        %471 = vmatprep.subr.mxu0 0.0
        %472 = vmatpush1.msra.mxu0 0.0
        %473 = vmatprep.subr.mxu0 0.0
        %474 = vmatpush1.msra.mxu0 0.0
        %475 = vmatprep.subr.mxu0 0.0
        %476 = vmatpush1.msra.mxu0 0.0
        %477 = vmatprep.subr.mxu0 0.0
        %478 = vmatpush1.msra.mxu0 0.0
        %479 = vmatprep.subr.mxu0 0.0
        %480 = vmatpush1.msra.mxu0 0.0
        %481 = vmatprep.mubr.f32.mxu0 0.0
        %482 = vmatmul.mubr.f32.gmra.mrb[0].mxu0 %v412
        %v483 = vpop.f32.mrb[0].mxu0
        %v484 = vadd.f32 0.0, %v483
        %v485 = vpop.f32.mrb[0].mxu0
        %v486 = vadd.f32 0.0, %v485
        %487 = vmatprep.mubr.f32.mxu0 0.0
        %488 = vmatmul.mubr.f32.gmra.mrb[0].mxu0 %v415
        %v489 = vpop.f32.mrb[0].mxu0
        %v490 = vadd.f32 0.0, %v489
        %v491 = vpop.f32.mrb[0].mxu0
        %v492 = vadd.f32 0.0, %v491
        %493 = vdwg.mxu0
        %v495 = vsel %vm410, %v396, 0
        %v498 = vsel %vm410, %v397, 0
        %500 = vmatprep.subr.mxu0 %v399
        %501 = vmatpush1.msra.mxu0 %v398
        %502 = vmatprep.subr.mxu0 %v401
        %503 = vmatpush1.msra.mxu0 %v400
        %504 = vmatprep.subr.mxu0 0.0
        %505 = vmatpush1.msra.mxu0 0.0
        %506 = vmatprep.subr.mxu0 0.0
        %507 = vmatpush1.msra.mxu0 0.0
        %508 = vmatprep.subr.mxu0 0.0
        %509 = vmatpush1.msra.mxu0 0.0
        %510 = vmatprep.subr.mxu0 0.0
        %511 = vmatpush1.msra.mxu0 0.0
        %512 = vmatprep.subr.mxu0 0.0
        %513 = vmatpush1.msra.mxu0 0.0
        %514 = vmatprep.subr.mxu0 0.0
        %515 = vmatpush1.msra.mxu0 0.0
        %516 = vmatprep.subr.mxu0 0.0
        %517 = vmatpush1.msra.mxu0 0.0
        %518 = vmatprep.subr.mxu0 0.0
        %519 = vmatpush1.msra.mxu0 0.0
        %520 = vmatprep.subr.mxu0 0.0
        %521 = vmatpush1.msra.mxu0 0.0
        %522 = vmatprep.subr.mxu0 0.0
        %523 = vmatpush1.msra.mxu0 0.0
        %524 = vmatprep.subr.mxu0 0.0
        %525 = vmatpush1.msra.mxu0 0.0
        %526 = vmatprep.subr.mxu0 0.0
        %527 = vmatpush1.msra.mxu0 0.0
        %528 = vmatprep.subr.mxu0 0.0
        %529 = vmatpush1.msra.mxu0 0.0
        %530 = vmatprep.subr.mxu0 0.0
        %531 = vmatpush1.msra.mxu0 0.0
        %532 = vmatprep.subr.mxu0 0.0
        %533 = vmatpush1.msra.mxu0 0.0
        %534 = vmatprep.subr.mxu0 0.0
        %535 = vmatpush1.msra.mxu0 0.0
        %536 = vmatprep.subr.mxu0 0.0
        %537 = vmatpush1.msra.mxu0 0.0
        %538 = vmatprep.subr.mxu0 0.0
        %539 = vmatpush1.msra.mxu0 0.0
        %540 = vmatprep.subr.mxu0 0.0
        %541 = vmatpush1.msra.mxu0 0.0
        %542 = vmatprep.subr.mxu0 0.0
        %543 = vmatpush1.msra.mxu0 0.0
        %544 = vmatprep.subr.mxu0 0.0
        %545 = vmatpush1.msra.mxu0 0.0
        %546 = vmatprep.subr.mxu0 0.0
        %547 = vmatpush1.msra.mxu0 0.0
        %548 = vmatprep.subr.mxu0 0.0
        %549 = vmatpush1.msra.mxu0 0.0
        %550 = vmatprep.subr.mxu0 0.0
        %551 = vmatpush1.msra.mxu0 0.0
        %552 = vmatprep.subr.mxu0 0.0
        %553 = vmatpush1.msra.mxu0 0.0
        %554 = vmatprep.subr.mxu0 0.0
        %555 = vmatpush1.msra.mxu0 0.0
        %556 = vmatprep.subr.mxu0 0.0
        %557 = vmatpush1.msra.mxu0 0.0
        %558 = vmatprep.subr.mxu0 0.0
        %559 = vmatpush1.msra.mxu0 0.0
        %560 = vmatprep.subr.mxu0 0.0
        %561 = vmatpush1.msra.mxu0 0.0
        %562 = vmatprep.subr.mxu0 0.0
        %563 = vmatpush1.msra.mxu0 0.0
        %564 = vmatprep.mubr.f32.mxu0 0.0
        %565 = vmatmul.mubr.f32.gmra.mrb[0].mxu0 %v495
        %v566 = vpop.f32.mrb[0].mxu0
        %v567 = vadd.f32 %v484, %v566
        %v568 = vpop.f32.mrb[0].mxu0
        %v569 = vadd.f32 %v486, %v568
        %570 = vmatprep.mubr.f32.mxu0 0.0
        %571 = vmatmul.mubr.f32.gmra.mrb[0].mxu0 %v498
        %v572 = vpop.f32.mrb[0].mxu0
        %v573 = vadd.f32 %v490, %v572
        %v574 = vpop.f32.mrb[0].mxu0
        %v575 = vadd.f32 %v492, %v574
        %576 = vdwg.mxu0
        %s577 = scalar_lea.vmem %s333, 32 [#allocation4]
        %v578 = vld [vmem:[%s577] sm:$0xff]
        %v579 = vld [vmem:[%s577 + $0x8] sm:$0xff]
        %s580 = scalar_lea.vmem [#allocation7], 64
        %v581 = vld [vmem:[%s580] sm:$0xff]
        %v582 = vld [vmem:[%s580 + $0x8] sm:$0xff]
        %v583 = vld [vmem:[%s580 + $0x10] sm:$0xff]
        %v584 = vld [vmem:[%s580 + $0x18] sm:$0xff]
        %v586 = vsel %vm410, %v578, 0
        %v589 = vsel %vm410, %v579, 0
        %591 = vmatprep.subr.mxu0 %v582
        %592 = vmatpush1.msra.mxu0 %v581
        %593 = vmatprep.subr.mxu0 %v584
        %594 = vmatpush1.msra.mxu0 %v583
        %595 = vmatprep.subr.mxu0 0.0
        %596 = vmatpush1.msra.mxu0 0.0
        %597 = vmatprep.subr.mxu0 0.0
        %598 = vmatpush1.msra.mxu0 0.0
        %599 = vmatprep.subr.mxu0 0.0
        %600 = vmatpush1.msra.mxu0 0.0
        %601 = vmatprep.subr.mxu0 0.0
        %602 = vmatpush1.msra.mxu0 0.0
        %603 = vmatprep.subr.mxu0 0.0
        %604 = vmatpush1.msra.mxu0 0.0
        %605 = vmatprep.subr.mxu0 0.0
        %606 = vmatpush1.msra.mxu0 0.0
        %607 = vmatprep.subr.mxu0 0.0
        %608 = vmatpush1.msra.mxu0 0.0
        %609 = vmatprep.subr.mxu0 0.0
        %610 = vmatpush1.msra.mxu0 0.0
        %611 = vmatprep.subr.mxu0 0.0
        %612 = vmatpush1.msra.mxu0 0.0
        %613 = vmatprep.subr.mxu0 0.0
        %614 = vmatpush1.msra.mxu0 0.0
        %615 = vmatprep.subr.mxu0 0.0
        %616 = vmatpush1.msra.mxu0 0.0
        %617 = vmatprep.subr.mxu0 0.0
        %618 = vmatpush1.msra.mxu0 0.0
        %619 = vmatprep.subr.mxu0 0.0
        %620 = vmatpush1.msra.mxu0 0.0
        %621 = vmatprep.subr.mxu0 0.0
        %622 = vmatpush1.msra.mxu0 0.0
        %623 = vmatprep.subr.mxu0 0.0
        %624 = vmatpush1.msra.mxu0 0.0
        %625 = vmatprep.subr.mxu0 0.0
        %626 = vmatpush1.msra.mxu0 0.0
        %627 = vmatprep.subr.mxu0 0.0
        %628 = vmatpush1.msra.mxu0 0.0
        %629 = vmatprep.subr.mxu0 0.0
        %630 = vmatpush1.msra.mxu0 0.0
        %631 = vmatprep.subr.mxu0 0.0
        %632 = vmatpush1.msra.mxu0 0.0
        %633 = vmatprep.subr.mxu0 0.0
        %634 = vmatpush1.msra.mxu0 0.0
        %635 = vmatprep.subr.mxu0 0.0
        %636 = vmatpush1.msra.mxu0 0.0
        %637 = vmatprep.subr.mxu0 0.0
        %638 = vmatpush1.msra.mxu0 0.0
        %639 = vmatprep.subr.mxu0 0.0
        %640 = vmatpush1.msra.mxu0 0.0
        %641 = vmatprep.subr.mxu0 0.0
        %642 = vmatpush1.msra.mxu0 0.0
        %643 = vmatprep.subr.mxu0 0.0
        %644 = vmatpush1.msra.mxu0 0.0
        %645 = vmatprep.subr.mxu0 0.0
        %646 = vmatpush1.msra.mxu0 0.0
        %647 = vmatprep.subr.mxu0 0.0
        %648 = vmatpush1.msra.mxu0 0.0
        %649 = vmatprep.subr.mxu0 0.0
        %650 = vmatpush1.msra.mxu0 0.0
        %651 = vmatprep.subr.mxu0 0.0
        %652 = vmatpush1.msra.mxu0 0.0
        %653 = vmatprep.subr.mxu0 0.0
        %654 = vmatpush1.msra.mxu0 0.0
        %655 = vmatprep.mubr.f32.mxu0 0.0
        %656 = vmatmul.mubr.f32.gmra.mrb[0].mxu0 %v586
        %v657 = vpop.f32.mrb[0].mxu0
        %v658 = vadd.f32 0.0, %v657
        %v659 = vpop.f32.mrb[0].mxu0
        %v660 = vadd.f32 0.0, %v659
        %661 = vmatprep.mubr.f32.mxu0 0.0
        %662 = vmatmul.mubr.f32.gmra.mrb[0].mxu0 %v589
        %v663 = vpop.f32.mrb[0].mxu0
        %v664 = vadd.f32 0.0, %v663
        %v665 = vpop.f32.mrb[0].mxu0
        %v666 = vadd.f32 0.0, %v665
        %667 = vdwg.mxu0
        %v668 = vadd.f32 %v567, %v658
        %v669 = vadd.f32 %v569, %v660
        %v670 = vadd.f32 %v573, %v664
        %v671 = vadd.f32 %v575, %v666
        %s672 = scalar_lea.vmem %s333, 48 [#allocation4]
        %v673 = vld [vmem:[%s672] sm:$0xff]
        %v674 = vld [vmem:[%s672 + $0x8] sm:$0xff]
        %s675 = scalar_lea.vmem [#allocation7], 96
        %v676 = vld [vmem:[%s675] sm:$0xff]
        %v677 = vld [vmem:[%s675 + $0x8] sm:$0xff]
        %v678 = vld [vmem:[%s675 + $0x10] sm:$0xff]
        %v679 = vld [vmem:[%s675 + $0x18] sm:$0xff]
        %v681 = vsel %vm410, %v673, 0
        %v684 = vsel %vm410, %v674, 0
        %686 = vmatprep.subr.mxu0 %v677
        %687 = vmatpush1.msra.mxu0 %v676
        %688 = vmatprep.subr.mxu0 %v679
        %689 = vmatpush1.msra.mxu0 %v678
        %690 = vmatprep.subr.mxu0 0.0
        %691 = vmatpush1.msra.mxu0 0.0
        %692 = vmatprep.subr.mxu0 0.0
        %693 = vmatpush1.msra.mxu0 0.0
        %694 = vmatprep.subr.mxu0 0.0
        %695 = vmatpush1.msra.mxu0 0.0
        %696 = vmatprep.subr.mxu0 0.0
        %697 = vmatpush1.msra.mxu0 0.0
        %698 = vmatprep.subr.mxu0 0.0
        %699 = vmatpush1.msra.mxu0 0.0
        %700 = vmatprep.subr.mxu0 0.0
        %701 = vmatpush1.msra.mxu0 0.0
        %702 = vmatprep.subr.mxu0 0.0
        %703 = vmatpush1.msra.mxu0 0.0
        %704 = vmatprep.subr.mxu0 0.0
        %705 = vmatpush1.msra.mxu0 0.0
        %706 = vmatprep.subr.mxu0 0.0
        %707 = vmatpush1.msra.mxu0 0.0
        %708 = vmatprep.subr.mxu0 0.0
        %709 = vmatpush1.msra.mxu0 0.0
        %710 = vmatprep.subr.mxu0 0.0
        %711 = vmatpush1.msra.mxu0 0.0
        %712 = vmatprep.subr.mxu0 0.0
        %713 = vmatpush1.msra.mxu0 0.0
        %714 = vmatprep.subr.mxu0 0.0
        %715 = vmatpush1.msra.mxu0 0.0
        %716 = vmatprep.subr.mxu0 0.0
        %717 = vmatpush1.msra.mxu0 0.0
        %718 = vmatprep.subr.mxu0 0.0
        %719 = vmatpush1.msra.mxu0 0.0
        %720 = vmatprep.subr.mxu0 0.0
        %721 = vmatpush1.msra.mxu0 0.0
        %722 = vmatprep.subr.mxu0 0.0
        %723 = vmatpush1.msra.mxu0 0.0
        %724 = vmatprep.subr.mxu0 0.0
        %725 = vmatpush1.msra.mxu0 0.0
        %726 = vmatprep.subr.mxu0 0.0
        %727 = vmatpush1.msra.mxu0 0.0
        %728 = vmatprep.subr.mxu0 0.0
        %729 = vmatpush1.msra.mxu0 0.0
        %730 = vmatprep.subr.mxu0 0.0
        %731 = vmatpush1.msra.mxu0 0.0
        %732 = vmatprep.subr.mxu0 0.0
        %733 = vmatpush1.msra.mxu0 0.0
        %734 = vmatprep.subr.mxu0 0.0
        %735 = vmatpush1.msra.mxu0 0.0
        %736 = vmatprep.subr.mxu0 0.0
        %737 = vmatpush1.msra.mxu0 0.0
        %738 = vmatprep.subr.mxu0 0.0
        %739 = vmatpush1.msra.mxu0 0.0
        %740 = vmatprep.subr.mxu0 0.0
        %741 = vmatpush1.msra.mxu0 0.0
        %742 = vmatprep.subr.mxu0 0.0
        %743 = vmatpush1.msra.mxu0 0.0
        %744 = vmatprep.subr.mxu0 0.0
        %745 = vmatpush1.msra.mxu0 0.0
        %746 = vmatprep.subr.mxu0 0.0
        %747 = vmatpush1.msra.mxu0 0.0
        %748 = vmatprep.subr.mxu0 0.0
        %749 = vmatpush1.msra.mxu0 0.0
        %750 = vmatprep.mubr.f32.mxu0 0.0
        %751 = vmatmul.mubr.f32.gmra.mrb[0].mxu0 %v681
        %v752 = vpop.f32.mrb[0].mxu0
        %v753 = vadd.f32 0.0, %v752
        %v754 = vpop.f32.mrb[0].mxu0
        %v755 = vadd.f32 0.0, %v754
        %756 = vmatprep.mubr.f32.mxu0 0.0
        %757 = vmatmul.mubr.f32.gmra.mrb[0].mxu0 %v684
        %v758 = vpop.f32.mrb[0].mxu0
        %v759 = vadd.f32 0.0, %v758
        %v760 = vpop.f32.mrb[0].mxu0
        %v761 = vadd.f32 0.0, %v760
        %762 = vdwg.mxu0
        %v763 = vadd.f32 %v668, %v753
        %v764 = vadd.f32 %v669, %v755
        %v765 = vadd.f32 %v670, %v759
        %v766 = vadd.f32 %v671, %v761
        %v767 = vld [vmem:[%s1] sm:$0xff]
        %v768 = vld [vmem:[%s1 + $0x8] sm:$0xff]
        %v769 = vld [vmem:[%s1 + $0x10] sm:$0xff]
        %v770 = vld [vmem:[%s1 + $0x18] sm:$0xff]
        %v772 = vsel %vm410, %v767, 0
        %v775 = vsel %vm410, %v768, 0
        %v778 = vsel %vm410, %v769, 0
        %v781 = vsel %vm410, %v770, 0
        %783 = vmatprep.subr.mxu0 %v764
        %784 = vmatpush1.msra.mxu0 %v763
        %785 = vmatprep.subr.mxu0 %v766
        %786 = vmatpush1.msra.mxu0 %v765
        %787 = vmatprep.subr.mxu0 0.0
        %788 = vmatpush1.msra.mxu0 0.0
        %789 = vmatprep.subr.mxu0 0.0
        %790 = vmatpush1.msra.mxu0 0.0
        %791 = vmatprep.subr.mxu0 0.0
        %792 = vmatpush1.msra.mxu0 0.0
        %793 = vmatprep.subr.mxu0 0.0
        %794 = vmatpush1.msra.mxu0 0.0
        %795 = vmatprep.subr.mxu0 0.0
        %796 = vmatpush1.msra.mxu0 0.0
        %797 = vmatprep.subr.mxu0 0.0
        %798 = vmatpush1.msra.mxu0 0.0
        %799 = vmatprep.subr.mxu0 0.0
        %800 = vmatpush1.msra.mxu0 0.0
        %801 = vmatprep.subr.mxu0 0.0
        %802 = vmatpush1.msra.mxu0 0.0
        %803 = vmatprep.subr.mxu0 0.0
        %804 = vmatpush1.msra.mxu0 0.0
        %805 = vmatprep.subr.mxu0 0.0
        %806 = vmatpush1.msra.mxu0 0.0
        %807 = vmatprep.subr.mxu0 0.0
        %808 = vmatpush1.msra.mxu0 0.0
        %809 = vmatprep.subr.mxu0 0.0
        %810 = vmatpush1.msra.mxu0 0.0
        %811 = vmatprep.subr.mxu0 0.0
        %812 = vmatpush1.msra.mxu0 0.0
        %813 = vmatprep.subr.mxu0 0.0
        %814 = vmatpush1.msra.mxu0 0.0
        %815 = vmatprep.subr.mxu0 0.0
        %816 = vmatpush1.msra.mxu0 0.0
        %817 = vmatprep.subr.mxu0 0.0
        %818 = vmatpush1.msra.mxu0 0.0
        %819 = vmatprep.subr.mxu0 0.0
        %820 = vmatpush1.msra.mxu0 0.0
        %821 = vmatprep.subr.mxu0 0.0
        %822 = vmatpush1.msra.mxu0 0.0
        %823 = vmatprep.subr.mxu0 0.0
        %824 = vmatpush1.msra.mxu0 0.0
        %825 = vmatprep.subr.mxu0 0.0
        %826 = vmatpush1.msra.mxu0 0.0
        %827 = vmatprep.subr.mxu0 0.0
        %828 = vmatpush1.msra.mxu0 0.0
        %829 = vmatprep.subr.mxu0 0.0
        %830 = vmatpush1.msra.mxu0 0.0
        %831 = vmatprep.subr.mxu0 0.0
        %832 = vmatpush1.msra.mxu0 0.0
        %833 = vmatprep.subr.mxu0 0.0
        %834 = vmatpush1.msra.mxu0 0.0
        %835 = vmatprep.subr.mxu0 0.0
        %836 = vmatpush1.msra.mxu0 0.0
        %837 = vmatprep.subr.mxu0 0.0
        %838 = vmatpush1.msra.mxu0 0.0
        %839 = vmatprep.subr.mxu0 0.0
        %840 = vmatpush1.msra.mxu0 0.0
        %841 = vmatprep.subr.mxu0 0.0
        %842 = vmatpush1.msra.mxu0 0.0
        %843 = vmatprep.subr.mxu0 0.0
        %844 = vmatpush1.msra.mxu0 0.0
        %845 = vmatprep.subr.mxu0 0.0
        %846 = vmatpush1.msra.mxu0 0.0
        %847 = vmatprep.mubr.f32.mxu0 0.0
        %848 = vmatmul.mubr.f32.gmra.mrb[0].mxu0 %v772
        %v849 = vpop.f32.mrb[0].mxu0
        %v850 = vadd.f32 0.0, %v849
        %v851 = vpop.f32.mrb[0].mxu0
        %v852 = vadd.f32 0.0, %v851
        %853 = vmatprep.mubr.f32.mxu0 0.0
        %854 = vmatmul.mubr.f32.gmra.mrb[0].mxu0 %v775
        %v855 = vpop.f32.mrb[0].mxu0
        %v856 = vadd.f32 0.0, %v855
        %v857 = vpop.f32.mrb[0].mxu0
        %v858 = vadd.f32 0.0, %v857
        %859 = vmatprep.mubr.f32.mxu0 0.0
        %860 = vmatmul.mubr.f32.gmra.mrb[0].mxu0 %v778
        %v861 = vpop.f32.mrb[0].mxu0
        %v862 = vadd.f32 0.0, %v861
        %v863 = vpop.f32.mrb[0].mxu0
        %v864 = vadd.f32 0.0, %v863
        %865 = vmatprep.mubr.f32.mxu0 0.0
        %866 = vmatmul.mubr.f32.gmra.mrb[0].mxu0 %v781
        %v867 = vpop.f32.mrb[0].mxu0
        %v868 = vadd.f32 0.0, %v867
        %v869 = vpop.f32.mrb[0].mxu0
        %v870 = vadd.f32 0.0, %v869
        %871 = vdwg.mxu0
        %vm880 = vcmask 1040384
        %v881 = vrot.slane %v850, 7
        %v882 = vrot.slane %v852, 7
        %v883 = vrot.slane %v856, 7
        %v884 = vsel %vm880, %v881, %v883
        %v885 = vrot.slane %v858, 7
        %v886 = vsel %vm880, %v882, %v885
        %v887 = vrot.slane %v862, 7
        %v888 = vsel %vm880, %v883, %v887
        %v889 = vrot.slane %v864, 7
        %v890 = vsel %vm880, %v885, %v889
        %v891 = vrot.slane %v868, 7
        %v892 = vsel %vm880, %v887, %v891
        %v893 = vrot.slane %v870, 7
        %v894 = vsel %vm880, %v889, %v893
        %905 = vst [vmem:[#allocation2] sm:$0xfe] %v881
        %vm906 = vcmask 64513
        %907 = vst.msk [vmem:[#allocation2 + $0x8] sm:$0xfe] %vm906, %v882
        %908 = vst [vmem:[#allocation2 + $0x10] sm:$0xff] %v884
        %vm909 = vcmask 64512
        %910 = vst.msk [vmem:[#allocation2 + $0x18] sm:$0xff] %vm909, %v886
        %911 = vst [vmem:[#allocation2 + $0x20] sm:$0xff] %v888
        %912 = vst.msk [vmem:[#allocation2 + $0x28] sm:$0xff] %vm909, %v890
        %913 = vst [vmem:[#allocation2 + $0x30] sm:$0xff] %v892
        %914 = vst.msk [vmem:[#allocation2 + $0x38] sm:$0xff] %vm909, %v894
        %915 = vst [vmem:[#allocation2 + $0x40] sm:$0x1] %v891
        %vm916 = vcmask 57344
        %917 = vst.msk [vmem:[#allocation2 + $0x48] sm:$0x1] %vm916, %v893
        %v918 = vld [vmem:[#allocation2] sm:$0xff]
        %v919 = vld [vmem:[#allocation2 + $0x8] sm:$0xff]
        %v920 = vld [vmem:[#allocation2 + $0x10] sm:$0xff]
        %v921 = vld [vmem:[#allocation2 + $0x18] sm:$0xff]
        %v922 = vld [vmem:[#allocation2 + $0x20] sm:$0xff]
        %v923 = vld [vmem:[#allocation2 + $0x28] sm:$0xff]
        %v924 = vld [vmem:[#allocation2 + $0x30] sm:$0xff]
        %v925 = vld [vmem:[#allocation2 + $0x38] sm:$0xff]
        %v926 = vld [vmem:[#allocation2] sm:$0xfe]
        %v927 = vld [vmem:[#allocation2 + $0x8] sm:$0xfe]
        %v928 = vld [vmem:[#allocation2 + $0x40] sm:$0x1]
        %v929 = vld [vmem:[#allocation2 + $0x48] sm:$0x1]
        %v930 = vld [vmem:[#allocation2] sm:$0xfc]
        %v931 = vld [vmem:[#allocation2 + $0x8] sm:$0xfc]
        %v932 = vld [vmem:[#allocation2 + $0x40] sm:$0x3]
        %v933 = vld [vmem:[#allocation2 + $0x48] sm:$0x3]
        %v934 = vld [vmem:[#allocation9] sm:$0xff]
        %v935 = vld [vmem:[#allocation9 + $0x8] sm:$0xff]
        %v936 = vld [vmem:[#allocation9 + $0x10] sm:$0xff]
        %v937 = vld [vmem:[#allocation9 + $0x18] sm:$0xff]
        %v938 = vld [vmem:[#allocation9 + $0x20] sm:$0xff]
        %v939 = vld [vmem:[#allocation9 + $0x28] sm:$0xff]
        %v940 = vld [vmem:[#allocation9 + $0x30] sm:$0xff]
        %v941 = vld [vmem:[#allocation9 + $0x38] sm:$0xff]
        %v942 = vld [vmem:[#allocation9 + $0x40] sm:$0xff]
        %v943 = vld [vmem:[#allocation9 + $0x48] sm:$0xff]
        %v944 = vld [vmem:[#allocation9 + $0x50] sm:$0xff]
        %v945 = vld [vmem:[#allocation9 + $0x58] sm:$0xff]
        %v946 = vld [vmem:[#allocation9 + $0x60] sm:$0xff]
        %v947 = vld [vmem:[#allocation9 + $0x68] sm:$0xff]
        %v948 = vld [vmem:[#allocation9 + $0x70] sm:$0xff]
        %v949 = vld [vmem:[#allocation9 + $0x78] sm:$0xff]
        %v950 = vld [vmem:[#allocation9 + $0x80] sm:$0xff]
        %v951 = vld [vmem:[#allocation9 + $0x88] sm:$0xff]
        %v952 = vld [vmem:[#allocation9 + $0x90] sm:$0xff]
        %v953 = vld [vmem:[#allocation9 + $0x98] sm:$0xff]
        %v954 = vld [vmem:[#allocation9 + $0xa0] sm:$0xff]
        %v955 = vld [vmem:[#allocation9 + $0xa8] sm:$0xff]
        %v956 = vld [vmem:[#allocation9 + $0xb0] sm:$0xff]
        %v957 = vld [vmem:[#allocation9 + $0xb8] sm:$0xff]
        %v958 = vld [vmem:[#allocation9 + $0xc0] sm:$0xff]
        %v959 = vld [vmem:[#allocation9 + $0xc8] sm:$0xff]
        %v960 = vld [vmem:[#allocation9 + $0xd0] sm:$0xff]
        %v961 = vld [vmem:[#allocation9 + $0xd8] sm:$0xff]
        %v962 = vld [vmem:[#allocation9 + $0xe0] sm:$0xff]
        %v963 = vld [vmem:[#allocation9 + $0xe8] sm:$0xff]
        %v964 = vld [vmem:[#allocation9 + $0xf0] sm:$0xff]
        %v965 = vld [vmem:[#allocation9 + $0xf8] sm:$0xff]
        %v966 = vld [vmem:[#allocation9 + $0x100] sm:$0xff]
        %v967 = vld [vmem:[#allocation9 + $0x108] sm:$0xff]
        %s968 = scalar_lea.vmem [#allocation9], 272
        %v969 = vld [vmem:[%s968] sm:$0xff]
        %v970 = vld [vmem:[%s968 + $0x8] sm:$0xff]
        %v971 = vld [vmem:[%s968 + $0x10] sm:$0xff]
        %v972 = vld [vmem:[%s968 + $0x18] sm:$0xff]
        %v973 = vld [vmem:[%s968 + $0x20] sm:$0xff]
        %v974 = vld [vmem:[%s968 + $0x28] sm:$0xff]
        %v975 = vld [vmem:[%s968 + $0x30] sm:$0xff]
        %v976 = vld [vmem:[%s968 + $0x38] sm:$0xff]
        %v977 = vld [vmem:[%s968 + $0x40] sm:$0xff]
        %v978 = vld [vmem:[%s968 + $0x48] sm:$0xff]
        %v979 = vld [vmem:[%s968 + $0x50] sm:$0xff]
        %v980 = vld [vmem:[%s968 + $0x58] sm:$0xff]
        %v981 = vld [vmem:[%s968 + $0x60] sm:$0xff]
        %v982 = vld [vmem:[%s968 + $0x68] sm:$0xff]
        %v983 = vld [vmem:[%s968 + $0x70] sm:$0xff]
        %v984 = vld [vmem:[%s968 + $0x78] sm:$0xff]
        %v985 = vld [vmem:[%s968 + $0x80] sm:$0xff]
        %v986 = vld [vmem:[%s968 + $0x88] sm:$0xff]
        %v987 = vld [vmem:[%s968 + $0x90] sm:$0xff]
        %v988 = vld [vmem:[%s968 + $0x98] sm:$0xff]
        %v989 = vld [vmem:[%s968 + $0xa0] sm:$0xff]
        %v990 = vld [vmem:[%s968 + $0xa8] sm:$0xff]
        %v991 = vld [vmem:[%s968 + $0xb0] sm:$0xff]
        %v992 = vld [vmem:[%s968 + $0xb8] sm:$0xff]
        %v993 = vld [vmem:[%s968 + $0xc0] sm:$0xff]
        %v994 = vld [vmem:[%s968 + $0xc8] sm:$0xff]
        %v995 = vld [vmem:[%s968 + $0xd0] sm:$0xff]
        %v996 = vld [vmem:[%s968 + $0xd8] sm:$0xff]
        %v997 = vld [vmem:[%s968 + $0xe0] sm:$0xff]
        %v998 = vld [vmem:[%s968 + $0xe8] sm:$0xff]
        %v999 = vld [vmem:[%s968 + $0xf0] sm:$0xff]
        %v1000 = vld [vmem:[%s968 + $0xf8] sm:$0xff]
        %v1001 = vld [vmem:[%s968 + $0x100] sm:$0xff]
        %v1002 = vld [vmem:[%s968 + $0x108] sm:$0xff]
        %vm1013 = vcmask 1046528
        %v1014 = vrot.slane %v926, 1
        %v1015 = vrot.slane %v920, 1
        %v1016 = vsel %vm1013, %v1014, %v1015
        %v1017 = vrot.slane %v927, 1
        %v1018 = vrot.slane %v921, 1
        %v1019 = vsel %vm1013, %v1017, %v1018
        %v1020 = vrot.slane %v922, 1
        %v1021 = vsel %vm1013, %v1015, %v1020
        %v1022 = vrot.slane %v923, 1
        %v1023 = vsel %vm1013, %v1018, %v1022
        %v1024 = vrot.slane %v924, 1
        %v1025 = vsel %vm1013, %v1020, %v1024
        %v1026 = vrot.slane %v925, 1
        %v1027 = vsel %vm1013, %v1022, %v1026
        %v1028 = vrot.slane %v928, 1
        %v1029 = vsel %vm1013, %v1024, %v1028
        %v1030 = vrot.slane %v929, 1
        %v1031 = vsel %vm1013, %v1026, %v1030
        %v1036 = vsel %vm909, %v1019, 0
        %v1038 = vsel %vm909, %v1023, 0
        %v1040 = vsel %vm909, %v1027, 0
        %v1042 = vsel %vm909, %v1031, 0
        %1044 = vmatprep.subr.mxu0 %v970
        %1045 = vmatpush1.msra.mxu0 %v969
        %1046 = vmatprep.subr.mxu0 %v972
        %1047 = vmatpush1.msra.mxu0 %v971
        %1048 = vmatprep.subr.mxu0 %v974
        %1049 = vmatpush1.msra.mxu0 %v973
        %1050 = vmatprep.subr.mxu0 %v976
        %1051 = vmatpush1.msra.mxu0 %v975
        %1052 = vmatprep.subr.mxu0 %v978
        %1053 = vmatpush1.msra.mxu0 %v977
        %1054 = vmatprep.subr.mxu0 %v980
        %1055 = vmatpush1.msra.mxu0 %v979
        %1056 = vmatprep.subr.mxu0 %v982
        %1057 = vmatpush1.msra.mxu0 %v981
        %1058 = vmatprep.subr.mxu0 %v984
        %1059 = vmatpush1.msra.mxu0 %v983
        %1060 = vmatprep.subr.mxu0 %v986
        %1061 = vmatpush1.msra.mxu0 %v985
        %1062 = vmatprep.subr.mxu0 %v988
        %1063 = vmatpush1.msra.mxu0 %v987
        %1064 = vmatprep.subr.mxu0 %v990
        %1065 = vmatpush1.msra.mxu0 %v989
        %1066 = vmatprep.subr.mxu0 %v992
        %1067 = vmatpush1.msra.mxu0 %v991
        %1068 = vmatprep.subr.mxu0 %v994
        %1069 = vmatpush1.msra.mxu0 %v993
        %1070 = vmatprep.subr.mxu0 %v996
        %1071 = vmatpush1.msra.mxu0 %v995
        %1072 = vmatprep.subr.mxu0 %v998
        %1073 = vmatpush1.msra.mxu0 %v997
        %1074 = vmatprep.subr.mxu0 %v1000
        %1075 = vmatpush1.msra.mxu0 %v999
        %1076 = vmatprep.subr.mxu0 %v1002
        %1077 = vmatpush1.msra.mxu0 %v1001
        %1078 = vmatprep.subr.mxu0 0.0
        %1079 = vmatpush1.msra.mxu0 0.0
        %1080 = vmatprep.subr.mxu0 0.0
        %1081 = vmatpush1.msra.mxu0 0.0
        %1082 = vmatprep.subr.mxu0 0.0
        %1083 = vmatpush1.msra.mxu0 0.0
        %1084 = vmatprep.subr.mxu0 0.0
        %1085 = vmatpush1.msra.mxu0 0.0
        %1086 = vmatprep.subr.mxu0 0.0
        %1087 = vmatpush1.msra.mxu0 0.0
        %1088 = vmatprep.subr.mxu0 0.0
        %1089 = vmatpush1.msra.mxu0 0.0
        %1090 = vmatprep.subr.mxu0 0.0
        %1091 = vmatpush1.msra.mxu0 0.0
        %1092 = vmatprep.subr.mxu0 0.0
        %1093 = vmatpush1.msra.mxu0 0.0
        %1094 = vmatprep.subr.mxu0 0.0
        %1095 = vmatpush1.msra.mxu0 0.0
        %1096 = vmatprep.subr.mxu0 0.0
        %1097 = vmatpush1.msra.mxu0 0.0
        %1098 = vmatprep.subr.mxu0 0.0
        %1099 = vmatpush1.msra.mxu0 0.0
        %1100 = vmatprep.subr.mxu0 0.0
        %1101 = vmatpush1.msra.mxu0 0.0
        %1102 = vmatprep.subr.mxu0 0.0
        %1103 = vmatpush1.msra.mxu0 0.0
        %1104 = vmatprep.subr.mxu0 0.0
        %1105 = vmatpush1.msra.mxu0 0.0
        %1106 = vmatprep.subr.mxu0 0.0
        %1107 = vmatpush1.msra.mxu0 0.0
        %1108 = vmatprep.mubr.f32.mxu0 %v1036
        %1109 = vmatmul.mubr.f32.gmra.mrb[0].mxu0 %v1016
        %v1110 = vpop.f32.mrb[0].mxu0
        %v1111 = vadd.f32 0.0, %v1110
        %v1112 = vpop.f32.mrb[0].mxu0
        %v1113 = vadd.f32 0.0, %v1112
        %1114 = vmatprep.mubr.f32.mxu0 %v1038
        %1115 = vmatmul.mubr.f32.gmra.mrb[0].mxu0 %v1021
        %v1116 = vpop.f32.mrb[0].mxu0
        %v1117 = vadd.f32 0.0, %v1116
        %v1118 = vpop.f32.mrb[0].mxu0
        %v1119 = vadd.f32 0.0, %v1118
        %1120 = vmatprep.mubr.f32.mxu0 %v1040
        %1121 = vmatmul.mubr.f32.gmra.mrb[0].mxu0 %v1025
        %v1122 = vpop.f32.mrb[0].mxu0
        %v1123 = vadd.f32 0.0, %v1122
        %v1124 = vpop.f32.mrb[0].mxu0
        %v1125 = vadd.f32 0.0, %v1124
        %1126 = vmatprep.mubr.f32.mxu0 %v1042
        %1127 = vmatmul.mubr.f32.gmra.mrb[0].mxu0 %v1029
        %v1128 = vpop.f32.mrb[0].mxu0
        %v1129 = vadd.f32 0.0, %v1128
        %v1130 = vpop.f32.mrb[0].mxu0
        %v1131 = vadd.f32 0.0, %v1130
        %1132 = vdwg.mxu0
        %v1134 = vsel %vm909, %v919, 0
        %v1136 = vsel %vm909, %v921, 0
        %v1138 = vsel %vm909, %v923, 0
        %v1140 = vsel %vm909, %v925, 0
        %1142 = vmatprep.subr.mxu0 %v935
        %1143 = vmatpush1.msra.mxu0 %v934
        %1144 = vmatprep.subr.mxu0 %v937
        %1145 = vmatpush1.msra.mxu0 %v936
        %1146 = vmatprep.subr.mxu0 %v939
        %1147 = vmatpush1.msra.mxu0 %v938
        %1148 = vmatprep.subr.mxu0 %v941
        %1149 = vmatpush1.msra.mxu0 %v940
        %1150 = vmatprep.subr.mxu0 %v943
        %1151 = vmatpush1.msra.mxu0 %v942
        %1152 = vmatprep.subr.mxu0 %v945
        %1153 = vmatpush1.msra.mxu0 %v944
        %1154 = vmatprep.subr.mxu0 %v947
        %1155 = vmatpush1.msra.mxu0 %v946
        %1156 = vmatprep.subr.mxu0 %v949
        %1157 = vmatpush1.msra.mxu0 %v948
        %1158 = vmatprep.subr.mxu0 %v951
        %1159 = vmatpush1.msra.mxu0 %v950
        %1160 = vmatprep.subr.mxu0 %v953
        %1161 = vmatpush1.msra.mxu0 %v952
        %1162 = vmatprep.subr.mxu0 %v955
        %1163 = vmatpush1.msra.mxu0 %v954
        %1164 = vmatprep.subr.mxu0 %v957
        %1165 = vmatpush1.msra.mxu0 %v956
        %1166 = vmatprep.subr.mxu0 %v959
        %1167 = vmatpush1.msra.mxu0 %v958
        %1168 = vmatprep.subr.mxu0 %v961
        %1169 = vmatpush1.msra.mxu0 %v960
        %1170 = vmatprep.subr.mxu0 %v963
        %1171 = vmatpush1.msra.mxu0 %v962
        %1172 = vmatprep.subr.mxu0 %v965
        %1173 = vmatpush1.msra.mxu0 %v964
        %1174 = vmatprep.subr.mxu0 %v967
        %1175 = vmatpush1.msra.mxu0 %v966
        %1176 = vmatprep.subr.mxu0 0.0
        %1177 = vmatpush1.msra.mxu0 0.0
        %1178 = vmatprep.subr.mxu0 0.0
        %1179 = vmatpush1.msra.mxu0 0.0
        %1180 = vmatprep.subr.mxu0 0.0
        %1181 = vmatpush1.msra.mxu0 0.0
        %1182 = vmatprep.subr.mxu0 0.0
        %1183 = vmatpush1.msra.mxu0 0.0
        %1184 = vmatprep.subr.mxu0 0.0
        %1185 = vmatpush1.msra.mxu0 0.0
        %1186 = vmatprep.subr.mxu0 0.0
        %1187 = vmatpush1.msra.mxu0 0.0
        %1188 = vmatprep.subr.mxu0 0.0
        %1189 = vmatpush1.msra.mxu0 0.0
        %1190 = vmatprep.subr.mxu0 0.0
        %1191 = vmatpush1.msra.mxu0 0.0
        %1192 = vmatprep.subr.mxu0 0.0
        %1193 = vmatpush1.msra.mxu0 0.0
        %1194 = vmatprep.subr.mxu0 0.0
        %1195 = vmatpush1.msra.mxu0 0.0
        %1196 = vmatprep.subr.mxu0 0.0
        %1197 = vmatpush1.msra.mxu0 0.0
        %1198 = vmatprep.subr.mxu0 0.0
        %1199 = vmatpush1.msra.mxu0 0.0
        %1200 = vmatprep.subr.mxu0 0.0
        %1201 = vmatpush1.msra.mxu0 0.0
        %1202 = vmatprep.subr.mxu0 0.0
        %1203 = vmatpush1.msra.mxu0 0.0
        %1204 = vmatprep.subr.mxu0 0.0
        %1205 = vmatpush1.msra.mxu0 0.0
        %1206 = vmatprep.mubr.f32.mxu0 %v1134
        %1207 = vmatmul.mubr.f32.gmra.mrb[0].mxu0 %v918
        %v1208 = vpop.f32.mrb[0].mxu0
        %v1209 = vadd.f32 %v1111, %v1208
        %v1210 = vpop.f32.mrb[0].mxu0
        %v1211 = vadd.f32 %v1113, %v1210
        %1212 = vmatprep.mubr.f32.mxu0 %v1136
        %1213 = vmatmul.mubr.f32.gmra.mrb[0].mxu0 %v920
        %v1214 = vpop.f32.mrb[0].mxu0
        %v1215 = vadd.f32 %v1117, %v1214
        %v1216 = vpop.f32.mrb[0].mxu0
        %v1217 = vadd.f32 %v1119, %v1216
        %1218 = vmatprep.mubr.f32.mxu0 %v1138
        %1219 = vmatmul.mubr.f32.gmra.mrb[0].mxu0 %v922
        %v1220 = vpop.f32.mrb[0].mxu0
        %v1221 = vadd.f32 %v1123, %v1220
        %v1222 = vpop.f32.mrb[0].mxu0
        %v1223 = vadd.f32 %v1125, %v1222
        %1224 = vmatprep.mubr.f32.mxu0 %v1140
        %1225 = vmatmul.mubr.f32.gmra.mrb[0].mxu0 %v924
        %v1226 = vpop.f32.mrb[0].mxu0
        %v1227 = vadd.f32 %v1129, %v1226
        %v1228 = vpop.f32.mrb[0].mxu0
        %v1229 = vadd.f32 %v1131, %v1228
        %1230 = vdwg.mxu0
        %s1231 = scalar_lea.vmem [#allocation9], 544
        %v1232 = vld [vmem:[%s1231] sm:$0xff]
        %v1233 = vld [vmem:[%s1231 + $0x8] sm:$0xff]
        %v1234 = vld [vmem:[%s1231 + $0x10] sm:$0xff]
        %v1235 = vld [vmem:[%s1231 + $0x18] sm:$0xff]
        %v1236 = vld [vmem:[%s1231 + $0x20] sm:$0xff]
        %v1237 = vld [vmem:[%s1231 + $0x28] sm:$0xff]
        %v1238 = vld [vmem:[%s1231 + $0x30] sm:$0xff]
        %v1239 = vld [vmem:[%s1231 + $0x38] sm:$0xff]
        %v1240 = vld [vmem:[%s1231 + $0x40] sm:$0xff]
        %v1241 = vld [vmem:[%s1231 + $0x48] sm:$0xff]
        %v1242 = vld [vmem:[%s1231 + $0x50] sm:$0xff]
        %v1243 = vld [vmem:[%s1231 + $0x58] sm:$0xff]
        %v1244 = vld [vmem:[%s1231 + $0x60] sm:$0xff]
        %v1245 = vld [vmem:[%s1231 + $0x68] sm:$0xff]
        %v1246 = vld [vmem:[%s1231 + $0x70] sm:$0xff]
        %v1247 = vld [vmem:[%s1231 + $0x78] sm:$0xff]
        %v1248 = vld [vmem:[%s1231 + $0x80] sm:$0xff]
        %v1249 = vld [vmem:[%s1231 + $0x88] sm:$0xff]
        %v1250 = vld [vmem:[%s1231 + $0x90] sm:$0xff]
        %v1251 = vld [vmem:[%s1231 + $0x98] sm:$0xff]
        %v1252 = vld [vmem:[%s1231 + $0xa0] sm:$0xff]
        %v1253 = vld [vmem:[%s1231 + $0xa8] sm:$0xff]
        %v1254 = vld [vmem:[%s1231 + $0xb0] sm:$0xff]
        %v1255 = vld [vmem:[%s1231 + $0xb8] sm:$0xff]
        %v1256 = vld [vmem:[%s1231 + $0xc0] sm:$0xff]
        %v1257 = vld [vmem:[%s1231 + $0xc8] sm:$0xff]
        %v1258 = vld [vmem:[%s1231 + $0xd0] sm:$0xff]
        %v1259 = vld [vmem:[%s1231 + $0xd8] sm:$0xff]
        %v1260 = vld [vmem:[%s1231 + $0xe0] sm:$0xff]
        %v1261 = vld [vmem:[%s1231 + $0xe8] sm:$0xff]
        %v1262 = vld [vmem:[%s1231 + $0xf0] sm:$0xff]
        %v1263 = vld [vmem:[%s1231 + $0xf8] sm:$0xff]
        %v1264 = vld [vmem:[%s1231 + $0x100] sm:$0xff]
        %v1265 = vld [vmem:[%s1231 + $0x108] sm:$0xff]
        %vm1270 = vcmask 1045504
        %v1271 = vrot.slane %v930, 2
        %v1272 = vrot.slane %v920, 2
        %v1273 = vsel %vm1270, %v1271, %v1272
        %v1274 = vrot.slane %v931, 2
        %v1275 = vrot.slane %v921, 2
        %v1276 = vsel %vm1270, %v1274, %v1275
        %v1277 = vrot.slane %v922, 2
        %v1278 = vsel %vm1270, %v1272, %v1277
        %v1279 = vrot.slane %v923, 2
        %v1280 = vsel %vm1270, %v1275, %v1279
        %v1281 = vrot.slane %v924, 2
        %v1282 = vsel %vm1270, %v1277, %v1281
        %v1283 = vrot.slane %v925, 2
        %v1284 = vsel %vm1270, %v1279, %v1283
        %v1285 = vrot.slane %v932, 2
        %v1286 = vsel %vm1270, %v1281, %v1285
        %v1287 = vrot.slane %v933, 2
        %v1288 = vsel %vm1270, %v1283, %v1287
        %v1293 = vsel %vm909, %v1276, 0
        %v1295 = vsel %vm909, %v1280, 0
        %v1297 = vsel %vm909, %v1284, 0
        %v1299 = vsel %vm909, %v1288, 0
        %1301 = vmatprep.subr.mxu0 %v1233
        %1302 = vmatpush1.msra.mxu0 %v1232
        %1303 = vmatprep.subr.mxu0 %v1235
        %1304 = vmatpush1.msra.mxu0 %v1234
        %1305 = vmatprep.subr.mxu0 %v1237
        %1306 = vmatpush1.msra.mxu0 %v1236
        %1307 = vmatprep.subr.mxu0 %v1239
        %1308 = vmatpush1.msra.mxu0 %v1238
        %1309 = vmatprep.subr.mxu0 %v1241
        %1310 = vmatpush1.msra.mxu0 %v1240
        %1311 = vmatprep.subr.mxu0 %v1243
        %1312 = vmatpush1.msra.mxu0 %v1242
        %1313 = vmatprep.subr.mxu0 %v1245
        %1314 = vmatpush1.msra.mxu0 %v1244
        %1315 = vmatprep.subr.mxu0 %v1247
        %1316 = vmatpush1.msra.mxu0 %v1246
        %1317 = vmatprep.subr.mxu0 %v1249
        %1318 = vmatpush1.msra.mxu0 %v1248
        %1319 = vmatprep.subr.mxu0 %v1251
        %1320 = vmatpush1.msra.mxu0 %v1250
        %1321 = vmatprep.subr.mxu0 %v1253
        %1322 = vmatpush1.msra.mxu0 %v1252
        %1323 = vmatprep.subr.mxu0 %v1255
        %1324 = vmatpush1.msra.mxu0 %v1254
        %1325 = vmatprep.subr.mxu0 %v1257
        %1326 = vmatpush1.msra.mxu0 %v1256
        %1327 = vmatprep.subr.mxu0 %v1259
        %1328 = vmatpush1.msra.mxu0 %v1258
        %1329 = vmatprep.subr.mxu0 %v1261
        %1330 = vmatpush1.msra.mxu0 %v1260
        %1331 = vmatprep.subr.mxu0 %v1263
        %1332 = vmatpush1.msra.mxu0 %v1262
        %1333 = vmatprep.subr.mxu0 %v1265
        %1334 = vmatpush1.msra.mxu0 %v1264
        %1335 = vmatprep.subr.mxu0 0.0
        %1336 = vmatpush1.msra.mxu0 0.0
        %1337 = vmatprep.subr.mxu0 0.0
        %1338 = vmatpush1.msra.mxu0 0.0
        %1339 = vmatprep.subr.mxu0 0.0
        %1340 = vmatpush1.msra.mxu0 0.0
        %1341 = vmatprep.subr.mxu0 0.0
        %1342 = vmatpush1.msra.mxu0 0.0
        %1343 = vmatprep.subr.mxu0 0.0
        %1344 = vmatpush1.msra.mxu0 0.0
        %1345 = vmatprep.subr.mxu0 0.0
        %1346 = vmatpush1.msra.mxu0 0.0
        %1347 = vmatprep.subr.mxu0 0.0
        %1348 = vmatpush1.msra.mxu0 0.0
        %1349 = vmatprep.subr.mxu0 0.0
        %1350 = vmatpush1.msra.mxu0 0.0
        %1351 = vmatprep.subr.mxu0 0.0
        %1352 = vmatpush1.msra.mxu0 0.0
        %1353 = vmatprep.subr.mxu0 0.0
        %1354 = vmatpush1.msra.mxu0 0.0
        %1355 = vmatprep.subr.mxu0 0.0
        %1356 = vmatpush1.msra.mxu0 0.0
        %1357 = vmatprep.subr.mxu0 0.0
        %1358 = vmatpush1.msra.mxu0 0.0
        %1359 = vmatprep.subr.mxu0 0.0
        %1360 = vmatpush1.msra.mxu0 0.0
        %1361 = vmatprep.subr.mxu0 0.0
        %1362 = vmatpush1.msra.mxu0 0.0
        %1363 = vmatprep.subr.mxu0 0.0
        %1364 = vmatpush1.msra.mxu0 0.0
        %1365 = vmatprep.mubr.f32.mxu0 %v1293
        %1366 = vmatmul.mubr.f32.gmra.mrb[0].mxu0 %v1273
        %v1367 = vpop.f32.mrb[0].mxu0
        %v1368 = vadd.f32 0.0, %v1367
        %v1369 = vpop.f32.mrb[0].mxu0
        %v1370 = vadd.f32 0.0, %v1369
        %1371 = vmatprep.mubr.f32.mxu0 %v1295
        %1372 = vmatmul.mubr.f32.gmra.mrb[0].mxu0 %v1278
        %v1373 = vpop.f32.mrb[0].mxu0
        %v1374 = vadd.f32 0.0, %v1373
        %v1375 = vpop.f32.mrb[0].mxu0
        %v1376 = vadd.f32 0.0, %v1375
        %1377 = vmatprep.mubr.f32.mxu0 %v1297
        %1378 = vmatmul.mubr.f32.gmra.mrb[0].mxu0 %v1282
        %v1379 = vpop.f32.mrb[0].mxu0
        %v1380 = vadd.f32 0.0, %v1379
        %v1381 = vpop.f32.mrb[0].mxu0
        %v1382 = vadd.f32 0.0, %v1381
        %1383 = vmatprep.mubr.f32.mxu0 %v1299
        %1384 = vmatmul.mubr.f32.gmra.mrb[0].mxu0 %v1286
        %v1385 = vpop.f32.mrb[0].mxu0
        %v1386 = vadd.f32 0.0, %v1385
        %v1387 = vpop.f32.mrb[0].mxu0
        %v1388 = vadd.f32 0.0, %v1387
        %1389 = vdwg.mxu0
        %v1390 = vadd.f32 %v1209, %v1368
        %v1391 = vadd.f32 %v1211, %v1370
        %v1392 = vadd.f32 %v1215, %v1374
        %v1393 = vadd.f32 %v1217, %v1376
        %v1394 = vadd.f32 %v1221, %v1380
        %v1395 = vadd.f32 %v1223, %v1382
        %v1396 = vadd.f32 %v1227, %v1386
        %v1397 = vadd.f32 %v1229, %v1388
        %v1398 = vld [vmem:[%s4] sm:$0x3]
        %v1400 = vlaneseq
        %v1401 = vshrl.u32 %v1400, 7
        %v1402 = vsub.s32 0, %v1401
        %v1403 = vrot.slane %v1398, %v1402
        %v1404 = vlaneseq
        %v1405 = vshrl.u32 %v1404, 7
        %v1406 = vsub.s32 1, %v1405
        %v1407 = vrot.slane %v1398, %v1406
        %v1410 = vadd.f32 %v1390, %v1403
        %v1411 = vadd.f32 %v1391, %v1407
        %v1412 = vadd.f32 %v1392, %v1403
        %v1413 = vadd.f32 %v1393, %v1407
        %v1414 = vadd.f32 %v1394, %v1403
        %v1415 = vadd.f32 %v1395, %v1407
        %v1416 = vadd.f32 %v1396, %v1403
        %v1417 = vadd.f32 %v1397, %v1407
        %v1418 = vmax.f32 %v1410, 0.0
        %v1419 = vmax.f32 %v1411, 0.0
        %v1420 = vmax.f32 %v1412, 0.0
        %v1421 = vmax.f32 %v1413, 0.0
        %v1422 = vmax.f32 %v1414, 0.0
        %v1423 = vmax.f32 %v1415, 0.0
        %v1424 = vmax.f32 %v1416, 0.0
        %v1425 = vmax.f32 %v1417, 0.0
        %v1434 = vrot.slane %v1418, 7
        %v1435 = vrot.slane %v1419, 7
        %v1436 = vrot.slane %v1420, 7
        %v1437 = vsel %vm880, %v1434, %v1436
        %v1438 = vrot.slane %v1421, 7
        %v1439 = vsel %vm880, %v1435, %v1438
        %v1440 = vrot.slane %v1422, 7
        %v1441 = vsel %vm880, %v1436, %v1440
        %v1442 = vrot.slane %v1423, 7
        %v1443 = vsel %vm880, %v1438, %v1442
        %v1444 = vrot.slane %v1424, 7
        %v1445 = vsel %vm880, %v1440, %v1444
        %v1446 = vrot.slane %v1425, 7
        %v1447 = vsel %vm880, %v1442, %v1446
        %1458 = vst [vmem:[#allocation3] sm:$0xfe] %v1434
        %1459 = vst.msk [vmem:[#allocation3 + $0x8] sm:$0xfe] %vm906, %v1435
        %1460 = vst [vmem:[#allocation3 + $0x10] sm:$0xff] %v1437
        %1461 = vst.msk [vmem:[#allocation3 + $0x18] sm:$0xff] %vm909, %v1439
        %1462 = vst [vmem:[#allocation3 + $0x20] sm:$0xff] %v1441
        %1463 = vst.msk [vmem:[#allocation3 + $0x28] sm:$0xff] %vm909, %v1443
        %1464 = vst [vmem:[#allocation3 + $0x30] sm:$0xff] %v1445
        %1465 = vst.msk [vmem:[#allocation3 + $0x38] sm:$0xff] %vm909, %v1447
        %1466 = vst [vmem:[#allocation3 + $0x40] sm:$0x1] %v1444
        %1467 = vst.msk [vmem:[#allocation3 + $0x48] sm:$0x1] %vm916, %v1446
        %v1468 = vld [vmem:[#allocation12] sm:$0xff]
        %v1469 = vld [vmem:[#allocation12 + $0x8] sm:$0xff]
        %v1470 = vld [vmem:[#allocation12 + $0x10] sm:$0xff]
        %v1471 = vld [vmem:[#allocation12 + $0x18] sm:$0xff]
        %v1472 = vld [vmem:[#allocation12 + $0x20] sm:$0xff]
        %v1473 = vld [vmem:[#allocation12 + $0x28] sm:$0xff]
        %v1474 = vld [vmem:[#allocation12 + $0x30] sm:$0xff]
        %v1475 = vld [vmem:[#allocation12 + $0x38] sm:$0xff]
        %v1476 = vld [vmem:[#allocation12 + $0x40] sm:$0xff]
        %v1477 = vld [vmem:[#allocation12 + $0x48] sm:$0xff]
        %v1478 = vld [vmem:[#allocation12 + $0x50] sm:$0xff]
        %v1479 = vld [vmem:[#allocation12 + $0x58] sm:$0xff]
        %v1480 = vld [vmem:[#allocation12 + $0x60] sm:$0xff]
        %v1481 = vld [vmem:[#allocation12 + $0x68] sm:$0xff]
        %v1482 = vld [vmem:[#allocation12 + $0x70] sm:$0xff]
        %v1483 = vld [vmem:[#allocation12 + $0x78] sm:$0xff]
        %v1484 = vld [vmem:[#allocation12 + $0x80] sm:$0xff]
        %v1485 = vld [vmem:[#allocation3] sm:$0xff]
        %v1486 = vld [vmem:[#allocation3 + $0x8] sm:$0xff]
        %v1487 = vld [vmem:[#allocation3 + $0x10] sm:$0xff]
        %v1488 = vld [vmem:[#allocation3 + $0x18] sm:$0xff]
        %v1489 = vld [vmem:[#allocation3 + $0x20] sm:$0xff]
        %v1490 = vld [vmem:[#allocation3 + $0x28] sm:$0xff]
        %v1491 = vld [vmem:[#allocation3 + $0x30] sm:$0xff]
        %v1492 = vld [vmem:[#allocation3 + $0x38] sm:$0xff]
        %v1493 = vld [vmem:[#allocation10] sm:$0xff]
        %v1494 = vld [vmem:[#allocation10 + $0x8] sm:$0xff]
        %v1495 = vld [vmem:[#allocation10 + $0x10] sm:$0xff]
        %v1496 = vld [vmem:[#allocation10 + $0x18] sm:$0xff]
        %v1497 = vld [vmem:[#allocation10 + $0x20] sm:$0xff]
        %v1498 = vld [vmem:[#allocation10 + $0x28] sm:$0xff]
        %v1499 = vld [vmem:[#allocation10 + $0x30] sm:$0xff]
        %v1500 = vld [vmem:[#allocation10 + $0x38] sm:$0xff]
        %v1501 = vld [vmem:[#allocation10 + $0x40] sm:$0xff]
        %v1502 = vld [vmem:[#allocation10 + $0x48] sm:$0xff]
        %v1503 = vld [vmem:[#allocation10 + $0x50] sm:$0xff]
        %v1504 = vld [vmem:[#allocation10 + $0x58] sm:$0xff]
        %v1505 = vld [vmem:[#allocation10 + $0x60] sm:$0xff]
        %v1506 = vld [vmem:[#allocation10 + $0x68] sm:$0xff]
        %v1507 = vld [vmem:[#allocation10 + $0x70] sm:$0xff]
        %v1508 = vld [vmem:[#allocation10 + $0x78] sm:$0xff]
        %v1509 = vld [vmem:[#allocation10 + $0x80] sm:$0xff]
        %v1511 = vsel %vm909, %v1486, 0
        %v1514 = vsel %vm909, %v1488, 0
        %v1517 = vsel %vm909, %v1490, 0
        %v1520 = vsel %vm909, %v1492, 0
        %1522 = vmatprep.subr.mxu0 0.0
        %1523 = vmatpush1.msra.mxu0 %v1493
        %1524 = vmatprep.subr.mxu0 0.0
        %1525 = vmatpush1.msra.mxu0 %v1494
        %1526 = vmatprep.subr.mxu0 0.0
        %1527 = vmatpush1.msra.mxu0 %v1495
        %1528 = vmatprep.subr.mxu0 0.0
        %1529 = vmatpush1.msra.mxu0 %v1496
        %1530 = vmatprep.subr.mxu0 0.0
        %1531 = vmatpush1.msra.mxu0 %v1497
        %1532 = vmatprep.subr.mxu0 0.0
        %1533 = vmatpush1.msra.mxu0 %v1498
        %1534 = vmatprep.subr.mxu0 0.0
        %1535 = vmatpush1.msra.mxu0 %v1499
        %1536 = vmatprep.subr.mxu0 0.0
        %1537 = vmatpush1.msra.mxu0 %v1500
        %1538 = vmatprep.subr.mxu0 0.0
        %1539 = vmatpush1.msra.mxu0 %v1501
        %1540 = vmatprep.subr.mxu0 0.0
        %1541 = vmatpush1.msra.mxu0 %v1502
        %1542 = vmatprep.subr.mxu0 0.0
        %1543 = vmatpush1.msra.mxu0 %v1503
        %1544 = vmatprep.subr.mxu0 0.0
        %1545 = vmatpush1.msra.mxu0 %v1504
        %1546 = vmatprep.subr.mxu0 0.0
        %1547 = vmatpush1.msra.mxu0 %v1505
        %1548 = vmatprep.subr.mxu0 0.0
        %1549 = vmatpush1.msra.mxu0 %v1506
        %1550 = vmatprep.subr.mxu0 0.0
        %1551 = vmatpush1.msra.mxu0 %v1507
        %1552 = vmatprep.subr.mxu0 0.0
        %1553 = vmatpush1.msra.mxu0 %v1508
        %1554 = vmatprep.subr.mxu0 0.0
        %1555 = vmatpush1.msra.mxu0 %v1509
        %1556 = vmatprep.subr.mxu0 0.0
        %1557 = vmatpush1.msra.mxu0 0.0
        %1558 = vmatprep.subr.mxu0 0.0
        %1559 = vmatpush1.msra.mxu0 0.0
        %1560 = vmatprep.subr.mxu0 0.0
        %1561 = vmatpush1.msra.mxu0 0.0
        %1562 = vmatprep.subr.mxu0 0.0
        %1563 = vmatpush1.msra.mxu0 0.0
        %1564 = vmatprep.subr.mxu0 0.0
        %1565 = vmatpush1.msra.mxu0 0.0
        %1566 = vmatprep.subr.mxu0 0.0
        %1567 = vmatpush1.msra.mxu0 0.0
        %1568 = vmatprep.subr.mxu0 0.0
        %1569 = vmatpush1.msra.mxu0 0.0
        %1570 = vmatprep.subr.mxu0 0.0
        %1571 = vmatpush1.msra.mxu0 0.0
        %1572 = vmatprep.subr.mxu0 0.0
        %1573 = vmatpush1.msra.mxu0 0.0
        %1574 = vmatprep.subr.mxu0 0.0
        %1575 = vmatpush1.msra.mxu0 0.0
        %1576 = vmatprep.subr.mxu0 0.0
        %1577 = vmatpush1.msra.mxu0 0.0
        %1578 = vmatprep.subr.mxu0 0.0
        %1579 = vmatpush1.msra.mxu0 0.0
        %1580 = vmatprep.subr.mxu0 0.0
        %1581 = vmatpush1.msra.mxu0 0.0
        %1582 = vmatprep.subr.mxu0 0.0
        %1583 = vmatpush1.msra.mxu0 0.0
        %1584 = vmatprep.subr.mxu0 0.0
        %1585 = vmatpush1.msra.mxu0 0.0
        %1586 = vmatprep.mubr.f32.mxu0 %v1511
        %1587 = vmatmul.mubr.f32.gmra.mrb[0].mxu0 %v1485
        %v1588 = vpop.f32.mrb[0].mxu0
        %v1589 = vadd.f32 0.0, %v1588
        %v1590 = vpop.f32.mrb[0].mxu0
        %1591 = vmatprep.mubr.f32.mxu0 %v1514
        %1592 = vmatmul.mubr.f32.gmra.mrb[0].mxu0 %v1487
        %v1593 = vpop.f32.mrb[0].mxu0
        %v1594 = vadd.f32 0.0, %v1593
        %v1595 = vpop.f32.mrb[0].mxu0
        %1596 = vmatprep.mubr.f32.mxu0 %v1517
        %1597 = vmatmul.mubr.f32.gmra.mrb[0].mxu0 %v1489
        %v1598 = vpop.f32.mrb[0].mxu0
        %v1599 = vadd.f32 0.0, %v1598
        %v1600 = vpop.f32.mrb[0].mxu0
        %1601 = vmatprep.mubr.f32.mxu0 %v1520
        %1602 = vmatmul.mubr.f32.gmra.mrb[0].mxu0 %v1491
        %v1603 = vpop.f32.mrb[0].mxu0
        %v1604 = vadd.f32 0.0, %v1603
        %v1605 = vpop.f32.mrb[0].mxu0
        %1606 = vdwg.mxu0
        %1607 = vmatprep.subr.mxu0 0.0
        %1608 = vmatpush1.msra.mxu0 %v1468
        %1609 = vmatprep.subr.mxu0 0.0
        %1610 = vmatpush1.msra.mxu0 %v1469
        %1611 = vmatprep.subr.mxu0 0.0
        %1612 = vmatpush1.msra.mxu0 %v1470
        %1613 = vmatprep.subr.mxu0 0.0
        %1614 = vmatpush1.msra.mxu0 %v1471
        %1615 = vmatprep.subr.mxu0 0.0
        %1616 = vmatpush1.msra.mxu0 %v1472
        %1617 = vmatprep.subr.mxu0 0.0
        %1618 = vmatpush1.msra.mxu0 %v1473
        %1619 = vmatprep.subr.mxu0 0.0
        %1620 = vmatpush1.msra.mxu0 %v1474
        %1621 = vmatprep.subr.mxu0 0.0
        %1622 = vmatpush1.msra.mxu0 %v1475
        %1623 = vmatprep.subr.mxu0 0.0
        %1624 = vmatpush1.msra.mxu0 %v1476
        %1625 = vmatprep.subr.mxu0 0.0
        %1626 = vmatpush1.msra.mxu0 %v1477
        %1627 = vmatprep.subr.mxu0 0.0
        %1628 = vmatpush1.msra.mxu0 %v1478
        %1629 = vmatprep.subr.mxu0 0.0
        %1630 = vmatpush1.msra.mxu0 %v1479
        %1631 = vmatprep.subr.mxu0 0.0
        %1632 = vmatpush1.msra.mxu0 %v1480
        %1633 = vmatprep.subr.mxu0 0.0
        %1634 = vmatpush1.msra.mxu0 %v1481
        %1635 = vmatprep.subr.mxu0 0.0
        %1636 = vmatpush1.msra.mxu0 %v1482
        %1637 = vmatprep.subr.mxu0 0.0
        %1638 = vmatpush1.msra.mxu0 %v1483
        %1639 = vmatprep.subr.mxu0 0.0
        %1640 = vmatpush1.msra.mxu0 %v1484
        %1641 = vmatprep.subr.mxu0 0.0
        %1642 = vmatpush1.msra.mxu0 0.0
        %1643 = vmatprep.subr.mxu0 0.0
        %1644 = vmatpush1.msra.mxu0 0.0
        %1645 = vmatprep.subr.mxu0 0.0
        %1646 = vmatpush1.msra.mxu0 0.0
        %1647 = vmatprep.subr.mxu0 0.0
        %1648 = vmatpush1.msra.mxu0 0.0
        %1649 = vmatprep.subr.mxu0 0.0
        %1650 = vmatpush1.msra.mxu0 0.0
        %1651 = vmatprep.subr.mxu0 0.0
        %1652 = vmatpush1.msra.mxu0 0.0
        %1653 = vmatprep.subr.mxu0 0.0
        %1654 = vmatpush1.msra.mxu0 0.0
        %1655 = vmatprep.subr.mxu0 0.0
        %1656 = vmatpush1.msra.mxu0 0.0
        %1657 = vmatprep.subr.mxu0 0.0
        %1658 = vmatpush1.msra.mxu0 0.0
        %1659 = vmatprep.subr.mxu0 0.0
        %1660 = vmatpush1.msra.mxu0 0.0
        %1661 = vmatprep.subr.mxu0 0.0
        %1662 = vmatpush1.msra.mxu0 0.0
        %1663 = vmatprep.subr.mxu0 0.0
        %1664 = vmatpush1.msra.mxu0 0.0
        %1665 = vmatprep.subr.mxu0 0.0
        %1666 = vmatpush1.msra.mxu0 0.0
        %1667 = vmatprep.subr.mxu0 0.0
        %1668 = vmatpush1.msra.mxu0 0.0
        %1669 = vmatprep.subr.mxu0 0.0
        %1670 = vmatpush1.msra.mxu0 0.0
        %1671 = vmatprep.mubr.f32.mxu0 %v1036
        %1672 = vmatmul.mubr.f32.gmra.mrb[0].mxu0 %v1016
        %v1673 = vpop.f32.mrb[0].mxu0
        %v1674 = vadd.f32 %v1589, %v1673
        %v1675 = vpop.f32.mrb[0].mxu0
        %1676 = vmatprep.mubr.f32.mxu0 %v1038
        %1677 = vmatmul.mubr.f32.gmra.mrb[0].mxu0 %v1021
        %v1678 = vpop.f32.mrb[0].mxu0
        %v1679 = vadd.f32 %v1594, %v1678
        %v1680 = vpop.f32.mrb[0].mxu0
        %1681 = vmatprep.mubr.f32.mxu0 %v1040
        %1682 = vmatmul.mubr.f32.gmra.mrb[0].mxu0 %v1025
        %v1683 = vpop.f32.mrb[0].mxu0
        %v1684 = vadd.f32 %v1599, %v1683
        %v1685 = vpop.f32.mrb[0].mxu0
        %1686 = vmatprep.mubr.f32.mxu0 %v1042
        %1687 = vmatmul.mubr.f32.gmra.mrb[0].mxu0 %v1029
        %v1688 = vpop.f32.mrb[0].mxu0
        %v1689 = vadd.f32 %v1604, %v1688
        %v1690 = vpop.f32.mrb[0].mxu0
        %1691 = vdwg.mxu0
        %v1692 = vld [vmem:[#allocation3] sm:$0xfe]
        %v1693 = vld [vmem:[#allocation3 + $0x8] sm:$0xfe]
        %v1694 = vld [vmem:[#allocation3 + $0x10] sm:$0xff]
        %v1695 = vld [vmem:[#allocation3 + $0x18] sm:$0xff]
        %v1696 = vld [vmem:[#allocation3 + $0x20] sm:$0xff]
        %v1697 = vld [vmem:[#allocation3 + $0x28] sm:$0xff]
        %v1698 = vld [vmem:[#allocation3 + $0x30] sm:$0xff]
        %v1699 = vld [vmem:[#allocation3 + $0x38] sm:$0xff]
        %v1700 = vld [vmem:[#allocation3 + $0x40] sm:$0x1]
        %v1701 = vld [vmem:[#allocation3 + $0x48] sm:$0x1]
        %s1702 = scalar_lea.vmem [#allocation10], 136
        %v1703 = vld [vmem:[%s1702] sm:$0xff]
        %v1704 = vld [vmem:[%s1702 + $0x8] sm:$0xff]
        %v1705 = vld [vmem:[%s1702 + $0x10] sm:$0xff]
        %v1706 = vld [vmem:[%s1702 + $0x18] sm:$0xff]
        %v1707 = vld [vmem:[%s1702 + $0x20] sm:$0xff]
        %v1708 = vld [vmem:[%s1702 + $0x28] sm:$0xff]
        %v1709 = vld [vmem:[%s1702 + $0x30] sm:$0xff]
        %v1710 = vld [vmem:[%s1702 + $0x38] sm:$0xff]
        %v1711 = vld [vmem:[%s1702 + $0x40] sm:$0xff]
        %v1712 = vld [vmem:[%s1702 + $0x48] sm:$0xff]
        %v1713 = vld [vmem:[%s1702 + $0x50] sm:$0xff]
        %v1714 = vld [vmem:[%s1702 + $0x58] sm:$0xff]
        %v1715 = vld [vmem:[%s1702 + $0x60] sm:$0xff]
        %v1716 = vld [vmem:[%s1702 + $0x68] sm:$0xff]
        %v1717 = vld [vmem:[%s1702 + $0x70] sm:$0xff]
        %v1718 = vld [vmem:[%s1702 + $0x78] sm:$0xff]
        %v1719 = vld [vmem:[%s1702 + $0x80] sm:$0xff]
        %v1730 = vrot.slane %v1692, 1
        %v1731 = vrot.slane %v1694, 1
        %v1732 = vsel %vm1013, %v1730, %v1731
        %v1733 = vrot.slane %v1693, 1
        %v1734 = vrot.slane %v1695, 1
        %v1735 = vsel %vm1013, %v1733, %v1734
        %v1736 = vrot.slane %v1696, 1
        %v1737 = vsel %vm1013, %v1731, %v1736
        %v1738 = vrot.slane %v1697, 1
        %v1739 = vsel %vm1013, %v1734, %v1738
        %v1740 = vrot.slane %v1698, 1
        %v1741 = vsel %vm1013, %v1736, %v1740
        %v1742 = vrot.slane %v1699, 1
        %v1743 = vsel %vm1013, %v1738, %v1742
        %v1744 = vrot.slane %v1700, 1
        %v1745 = vsel %vm1013, %v1740, %v1744
        %v1746 = vrot.slane %v1701, 1
        %v1747 = vsel %vm1013, %v1742, %v1746
        %v1752 = vsel %vm909, %v1735, 0
        %v1754 = vsel %vm909, %v1739, 0
        %v1756 = vsel %vm909, %v1743, 0
        %v1758 = vsel %vm909, %v1747, 0
        %1760 = vmatprep.subr.mxu0 0.0
        %1761 = vmatpush1.msra.mxu0 %v1703
        %1762 = vmatprep.subr.mxu0 0.0
        %1763 = vmatpush1.msra.mxu0 %v1704
        %1764 = vmatprep.subr.mxu0 0.0
        %1765 = vmatpush1.msra.mxu0 %v1705
        %1766 = vmatprep.subr.mxu0 0.0
        %1767 = vmatpush1.msra.mxu0 %v1706
        %1768 = vmatprep.subr.mxu0 0.0
        %1769 = vmatpush1.msra.mxu0 %v1707
        %1770 = vmatprep.subr.mxu0 0.0
        %1771 = vmatpush1.msra.mxu0 %v1708
        %1772 = vmatprep.subr.mxu0 0.0
        %1773 = vmatpush1.msra.mxu0 %v1709
        %1774 = vmatprep.subr.mxu0 0.0
        %1775 = vmatpush1.msra.mxu0 %v1710
        %1776 = vmatprep.subr.mxu0 0.0
        %1777 = vmatpush1.msra.mxu0 %v1711
        %1778 = vmatprep.subr.mxu0 0.0
        %1779 = vmatpush1.msra.mxu0 %v1712
        %1780 = vmatprep.subr.mxu0 0.0
        %1781 = vmatpush1.msra.mxu0 %v1713
        %1782 = vmatprep.subr.mxu0 0.0
        %1783 = vmatpush1.msra.mxu0 %v1714
        %1784 = vmatprep.subr.mxu0 0.0
        %1785 = vmatpush1.msra.mxu0 %v1715
        %1786 = vmatprep.subr.mxu0 0.0
        %1787 = vmatpush1.msra.mxu0 %v1716
        %1788 = vmatprep.subr.mxu0 0.0
        %1789 = vmatpush1.msra.mxu0 %v1717
        %1790 = vmatprep.subr.mxu0 0.0
        %1791 = vmatpush1.msra.mxu0 %v1718
        %1792 = vmatprep.subr.mxu0 0.0
        %1793 = vmatpush1.msra.mxu0 %v1719
        %1794 = vmatprep.subr.mxu0 0.0
        %1795 = vmatpush1.msra.mxu0 0.0
        %1796 = vmatprep.subr.mxu0 0.0
        %1797 = vmatpush1.msra.mxu0 0.0
        %1798 = vmatprep.subr.mxu0 0.0
        %1799 = vmatpush1.msra.mxu0 0.0
        %1800 = vmatprep.subr.mxu0 0.0
        %1801 = vmatpush1.msra.mxu0 0.0
        %1802 = vmatprep.subr.mxu0 0.0
        %1803 = vmatpush1.msra.mxu0 0.0
        %1804 = vmatprep.subr.mxu0 0.0
        %1805 = vmatpush1.msra.mxu0 0.0
        %1806 = vmatprep.subr.mxu0 0.0
        %1807 = vmatpush1.msra.mxu0 0.0
        %1808 = vmatprep.subr.mxu0 0.0
        %1809 = vmatpush1.msra.mxu0 0.0
        %1810 = vmatprep.subr.mxu0 0.0
        %1811 = vmatpush1.msra.mxu0 0.0
        %1812 = vmatprep.subr.mxu0 0.0
        %1813 = vmatpush1.msra.mxu0 0.0
        %1814 = vmatprep.subr.mxu0 0.0
        %1815 = vmatpush1.msra.mxu0 0.0
        %1816 = vmatprep.subr.mxu0 0.0
        %1817 = vmatpush1.msra.mxu0 0.0
        %1818 = vmatprep.subr.mxu0 0.0
        %1819 = vmatpush1.msra.mxu0 0.0
        %1820 = vmatprep.subr.mxu0 0.0
        %1821 = vmatpush1.msra.mxu0 0.0
        %1822 = vmatprep.subr.mxu0 0.0
        %1823 = vmatpush1.msra.mxu0 0.0
        %1824 = vmatprep.mubr.f32.mxu0 %v1752
        %1825 = vmatmul.mubr.f32.gmra.mrb[0].mxu0 %v1732
        %v1826 = vpop.f32.mrb[0].mxu0
        %v1827 = vadd.f32 0.0, %v1826
        %v1828 = vpop.f32.mrb[0].mxu0
        %1829 = vmatprep.mubr.f32.mxu0 %v1754
        %1830 = vmatmul.mubr.f32.gmra.mrb[0].mxu0 %v1737
        %v1831 = vpop.f32.mrb[0].mxu0
        %v1832 = vadd.f32 0.0, %v1831
        %v1833 = vpop.f32.mrb[0].mxu0
        %1834 = vmatprep.mubr.f32.mxu0 %v1756
        %1835 = vmatmul.mubr.f32.gmra.mrb[0].mxu0 %v1741
        %v1836 = vpop.f32.mrb[0].mxu0
        %v1837 = vadd.f32 0.0, %v1836
        %v1838 = vpop.f32.mrb[0].mxu0
        %1839 = vmatprep.mubr.f32.mxu0 %v1758
        %1840 = vmatmul.mubr.f32.gmra.mrb[0].mxu0 %v1745
        %v1841 = vpop.f32.mrb[0].mxu0
        %v1842 = vadd.f32 0.0, %v1841
        %v1843 = vpop.f32.mrb[0].mxu0
        %1844 = vdwg.mxu0
        %v1845 = vadd.f32 %v1674, %v1827
        %v1846 = vadd.f32 %v1679, %v1832
        %v1847 = vadd.f32 %v1684, %v1837
        %v1848 = vadd.f32 %v1689, %v1842
        %v1849 = vld [vmem:[#allocation3] sm:$0xfc]
        %v1850 = vld [vmem:[#allocation3 + $0x8] sm:$0xfc]
        %v1851 = vld [vmem:[#allocation3 + $0x40] sm:$0x3]
        %v1852 = vld [vmem:[#allocation3 + $0x48] sm:$0x3]
        %s1853 = scalar_lea.vmem [#allocation10], 272
        %v1854 = vld [vmem:[%s1853] sm:$0xff]
        %v1855 = vld [vmem:[%s1853 + $0x8] sm:$0xff]
        %v1856 = vld [vmem:[%s1853 + $0x10] sm:$0xff]
        %v1857 = vld [vmem:[%s1853 + $0x18] sm:$0xff]
        %v1858 = vld [vmem:[%s1853 + $0x20] sm:$0xff]
        %v1859 = vld [vmem:[%s1853 + $0x28] sm:$0xff]
        %v1860 = vld [vmem:[%s1853 + $0x30] sm:$0xff]
        %v1861 = vld [vmem:[%s1853 + $0x38] sm:$0xff]
        %v1862 = vld [vmem:[%s1853 + $0x40] sm:$0xff]
        %v1863 = vld [vmem:[%s1853 + $0x48] sm:$0xff]
        %v1864 = vld [vmem:[%s1853 + $0x50] sm:$0xff]
        %v1865 = vld [vmem:[%s1853 + $0x58] sm:$0xff]
        %v1866 = vld [vmem:[%s1853 + $0x60] sm:$0xff]
        %v1867 = vld [vmem:[%s1853 + $0x68] sm:$0xff]
        %v1868 = vld [vmem:[%s1853 + $0x70] sm:$0xff]
        %v1869 = vld [vmem:[%s1853 + $0x78] sm:$0xff]
        %v1870 = vld [vmem:[%s1853 + $0x80] sm:$0xff]
        %v1875 = vrot.slane %v1849, 2
        %v1876 = vrot.slane %v1694, 2
        %v1877 = vsel %vm1270, %v1875, %v1876
        %v1878 = vrot.slane %v1850, 2
        %v1879 = vrot.slane %v1695, 2
        %v1880 = vsel %vm1270, %v1878, %v1879
        %v1881 = vrot.slane %v1696, 2
        %v1882 = vsel %vm1270, %v1876, %v1881
        %v1883 = vrot.slane %v1697, 2
        %v1884 = vsel %vm1270, %v1879, %v1883
        %v1885 = vrot.slane %v1698, 2
        %v1886 = vsel %vm1270, %v1881, %v1885
        %v1887 = vrot.slane %v1699, 2
        %v1888 = vsel %vm1270, %v1883, %v1887
        %v1889 = vrot.slane %v1851, 2
        %v1890 = vsel %vm1270, %v1885, %v1889
        %v1891 = vrot.slane %v1852, 2
        %v1892 = vsel %vm1270, %v1887, %v1891
        %v1897 = vsel %vm909, %v1880, 0
        %v1899 = vsel %vm909, %v1884, 0
        %v1901 = vsel %vm909, %v1888, 0
        %v1903 = vsel %vm909, %v1892, 0
        %1905 = vmatprep.subr.mxu0 0.0
        %1906 = vmatpush1.msra.mxu0 %v1854
        %1907 = vmatprep.subr.mxu0 0.0
        %1908 = vmatpush1.msra.mxu0 %v1855
        %1909 = vmatprep.subr.mxu0 0.0
        %1910 = vmatpush1.msra.mxu0 %v1856
        %1911 = vmatprep.subr.mxu0 0.0
        %1912 = vmatpush1.msra.mxu0 %v1857
        %1913 = vmatprep.subr.mxu0 0.0
        %1914 = vmatpush1.msra.mxu0 %v1858
        %1915 = vmatprep.subr.mxu0 0.0
        %1916 = vmatpush1.msra.mxu0 %v1859
        %1917 = vmatprep.subr.mxu0 0.0
        %1918 = vmatpush1.msra.mxu0 %v1860
        %1919 = vmatprep.subr.mxu0 0.0
        %1920 = vmatpush1.msra.mxu0 %v1861
        %1921 = vmatprep.subr.mxu0 0.0
        %1922 = vmatpush1.msra.mxu0 %v1862
        %1923 = vmatprep.subr.mxu0 0.0
        %1924 = vmatpush1.msra.mxu0 %v1863
        %1925 = vmatprep.subr.mxu0 0.0
        %1926 = vmatpush1.msra.mxu0 %v1864
        %1927 = vmatprep.subr.mxu0 0.0
        %1928 = vmatpush1.msra.mxu0 %v1865
        %1929 = vmatprep.subr.mxu0 0.0
        %1930 = vmatpush1.msra.mxu0 %v1866
        %1931 = vmatprep.subr.mxu0 0.0
        %1932 = vmatpush1.msra.mxu0 %v1867
        %1933 = vmatprep.subr.mxu0 0.0
        %1934 = vmatpush1.msra.mxu0 %v1868
        %1935 = vmatprep.subr.mxu0 0.0
        %1936 = vmatpush1.msra.mxu0 %v1869
        %1937 = vmatprep.subr.mxu0 0.0
        %1938 = vmatpush1.msra.mxu0 %v1870
        %1939 = vmatprep.subr.mxu0 0.0
        %1940 = vmatpush1.msra.mxu0 0.0
        %1941 = vmatprep.subr.mxu0 0.0
        %1942 = vmatpush1.msra.mxu0 0.0
        %1943 = vmatprep.subr.mxu0 0.0
        %1944 = vmatpush1.msra.mxu0 0.0
        %1945 = vmatprep.subr.mxu0 0.0
        %1946 = vmatpush1.msra.mxu0 0.0
        %1947 = vmatprep.subr.mxu0 0.0
        %1948 = vmatpush1.msra.mxu0 0.0
        %1949 = vmatprep.subr.mxu0 0.0
        %1950 = vmatpush1.msra.mxu0 0.0
        %1951 = vmatprep.subr.mxu0 0.0
        %1952 = vmatpush1.msra.mxu0 0.0
        %1953 = vmatprep.subr.mxu0 0.0
        %1954 = vmatpush1.msra.mxu0 0.0
        %1955 = vmatprep.subr.mxu0 0.0
        %1956 = vmatpush1.msra.mxu0 0.0
        %1957 = vmatprep.subr.mxu0 0.0
        %1958 = vmatpush1.msra.mxu0 0.0
        %1959 = vmatprep.subr.mxu0 0.0
        %1960 = vmatpush1.msra.mxu0 0.0
        %1961 = vmatprep.subr.mxu0 0.0
        %1962 = vmatpush1.msra.mxu0 0.0
        %1963 = vmatprep.subr.mxu0 0.0
        %1964 = vmatpush1.msra.mxu0 0.0
        %1965 = vmatprep.subr.mxu0 0.0
        %1966 = vmatpush1.msra.mxu0 0.0
        %1967 = vmatprep.subr.mxu0 0.0
        %1968 = vmatpush1.msra.mxu0 0.0
        %1969 = vmatprep.mubr.f32.mxu0 %v1897
        %1970 = vmatmul.mubr.f32.gmra.mrb[0].mxu0 %v1877
        %v1971 = vpop.f32.mrb[0].mxu0
        %v1972 = vadd.f32 0.0, %v1971
        %v1973 = vpop.f32.mrb[0].mxu0
        %1974 = vmatprep.mubr.f32.mxu0 %v1899
        %1975 = vmatmul.mubr.f32.gmra.mrb[0].mxu0 %v1882
        %v1976 = vpop.f32.mrb[0].mxu0
        %v1977 = vadd.f32 0.0, %v1976
        %v1978 = vpop.f32.mrb[0].mxu0
        %1979 = vmatprep.mubr.f32.mxu0 %v1901
        %1980 = vmatmul.mubr.f32.gmra.mrb[0].mxu0 %v1886
        %v1981 = vpop.f32.mrb[0].mxu0
        %v1982 = vadd.f32 0.0, %v1981
        %v1983 = vpop.f32.mrb[0].mxu0
        %1984 = vmatprep.mubr.f32.mxu0 %v1903
        %1985 = vmatmul.mubr.f32.gmra.mrb[0].mxu0 %v1890
        %v1986 = vpop.f32.mrb[0].mxu0
        %v1987 = vadd.f32 0.0, %v1986
        %v1988 = vpop.f32.mrb[0].mxu0
        %1989 = vdwg.mxu0
        %v1990 = vadd.f32 %v1845, %v1972
        %v1991 = vadd.f32 %v1846, %v1977
        %v1992 = vadd.f32 %v1847, %v1982
        %v1993 = vadd.f32 %v1848, %v1987
        %v1994 = vld [vmem:[%s7] sm:$0x1]
        %v1996 = vlaneseq
        %v1997 = vshrl.u32 %v1996, 7
        %v1998 = vsub.s32 0, %v1997
        %v1999 = vrot.slane %v1994, %v1998
        %v2001 = vadd.f32 %v1990, %v1999
        %v2002 = vadd.f32 %v1991, %v1999
        %v2003 = vadd.f32 %v1992, %v1999
        %v2004 = vadd.f32 %v1993, %v1999
        %v2005 = vmax.f32 %v2001, 0.0
        %v2006 = vmax.f32 %v2002, 0.0
        %v2007 = vmax.f32 %v2003, 0.0
        %v2008 = vmax.f32 %v2004, 0.0
        %vm2009 = vcmask 261120
        %2010 = vst.msk [vmem:[%s381] sm:$0xff] %vm2009, %v2005
        %2011 = vst.msk [vmem:[%s381 + $0x8] sm:$0xff] %vm2009, %v2006
        %2012 = vst.msk [vmem:[%s381 + $0x10] sm:$0xff] %vm2009, %v2007
        %2013 = vst.msk [vmem:[%s381 + $0x18] sm:$0xff] %vm2009, %v2008
        %2018 = vrot.lane.b32.xlu0 %v2005, 96
        %v2019 = vpop.permute.xlu0 %2018
        %2020 = vrot.lane.b32.xlu0 %v2006, 96
        %v2021 = vpop.permute.xlu0 %2020
        %2022 = vrot.lane.b32.xlu0 %v2007, 96
        %v2023 = vpop.permute.xlu0 %2022
        %2024 = vrot.lane.b32.xlu0 %v2008, 96
        %v2025 = vpop.permute.xlu0 %2024
        %s2030 = scalar_lea.vmem %s381, 32 [#allocation13]
        %2031 = vst.msk [vmem:[%s2030] sm:$0xff] %vm2009, %v2019
        %2032 = vst.msk [vmem:[%s2030 + $0x8] sm:$0xff] %vm2009, %v2021
        %2033 = vst.msk [vmem:[%s2030 + $0x10] sm:$0xff] %vm2009, %v2023
        %2034 = vst.msk [vmem:[%s2030 + $0x18] sm:$0xff] %vm2009, %v2025
        %2035 = vrot.lane.b32.xlu0 %v2005, 64
        %v2036 = vpop.permute.xlu0 %2035
        %2037 = vrot.lane.b32.xlu0 %v2006, 64
        %v2038 = vpop.permute.xlu0 %2037
        %2039 = vrot.lane.b32.xlu0 %v2007, 64
        %v2040 = vpop.permute.xlu0 %2039
        %2041 = vrot.lane.b32.xlu0 %v2008, 64
        %v2042 = vpop.permute.xlu0 %2041
        %s2047 = scalar_lea.vmem %s381, 64 [#allocation13]
        %2048 = vst.msk [vmem:[%s2047] sm:$0xff] %vm2009, %v2036
        %2049 = vst.msk [vmem:[%s2047 + $0x8] sm:$0xff] %vm2009, %v2038
        %2050 = vst.msk [vmem:[%s2047 + $0x10] sm:$0xff] %vm2009, %v2040
        %2051 = vst.msk [vmem:[%s2047 + $0x18] sm:$0xff] %vm2009, %v2042
        %2052 = vrot.lane.b32.xlu0 %v2005, 32
        %v2053 = vpop.permute.xlu0 %2052
        %2054 = vrot.lane.b32.xlu0 %v2006, 32
        %v2055 = vpop.permute.xlu0 %2054
        %2056 = vrot.lane.b32.xlu0 %v2007, 32
        %v2057 = vpop.permute.xlu0 %2056
        %2058 = vrot.lane.b32.xlu0 %v2008, 32
        %v2059 = vpop.permute.xlu0 %2058
        %s2064 = scalar_lea.vmem %s381, 96 [#allocation13]
        %2065 = vst.msk [vmem:[%s2064] sm:$0xff] %vm2009, %v2053
        %2066 = vst.msk [vmem:[%s2064 + $0x8] sm:$0xff] %vm2009, %v2055
        %2067 = vst.msk [vmem:[%s2064 + $0x10] sm:$0xff] %vm2009, %v2057
        %2068 = vst.msk [vmem:[%s2064 + $0x18] sm:$0xff] %vm2009, %v2059
        %s2069 = sand.u32 %s208, 1
        %s2070 = scalar_lea.sflag [#allocation6], %s2069
        %s2071 = sand.u32 %s208, 1
        %s2072 = smul.addr %s2071, 128
        %s2073 = scalar_lea.vmem [#allocation13], %s2072
        // Predicated region
        $region73: #{tpu_custom_call.1} parent=51 // pred_check
          %p2074 = pneg %p218
        $region74: #{tpu_custom_call.1} parent=51 // pred_check_branch
          %2076 = sbr.rel (%p2074) target = $region76
        $region75: #{tpu_custom_call.1} parent=51 // pred_region
          %s2078 = ssub.s32 2048, 2048
          %2079 = vsyncadd %s2070, %s2078
          %s2080 = smul.addr %s27, 16
          %s2081 = smul.addr %s2080, 128
          %s2082 = scalar_lea.hbm %s8, %s2081
          %s2083 = sshll.u32 %s2073, 4
          %s2084 = int_to_ptr.vmem [resolvable:$true] %s2083
          %2089 = dma.vmem_to_hbm [thread:$0]  %s2084, 2048, %s2082, %s2070, 128, 128, 8
        $region76: #{tpu_custom_call.1} parent=51 // pred_fallthru
          _
      $region52: #{tpu_custom_call.1} parent=5 // pred_fallthru
        _
      %p2090 = scmp.le.s32.totalorder 2, %s22
      // Predicated region
      $region77: #{tpu_custom_call.1} parent=5 // pred_check
        %p2091 = pneg %p2090
      $region78: #{tpu_custom_call.1} parent=5 // pred_check_branch
        %2093 = sbr.rel (%p2091) target = $region80
      $region79: #{tpu_custom_call.1} parent=5 // pred_region
        %s2094 = ssub.s32 %s22, 2
        // Predicated region
        $region81: #{tpu_custom_call.1} parent=79 // pred_check
          %p2095 = pneg %p224
        $region82: #{tpu_custom_call.1} parent=79 // pred_check_branch
          %2097 = sbr.rel (%p2095) target = $region84
        $region83: #{tpu_custom_call.1} parent=79 // pred_region
          %s2098 = sand.u32 %s209, 1
          %s2099 = scalar_lea.sflag [#allocation6], %s2098
          %s2100 = sand.u32 %s209, 1
          %s2101 = smul.addr %s2100, 128
          %s2102 = scalar_lea.vmem [#allocation13], %s2101
          %2103 = dma.done %s2099, 2048
        $region84: #{tpu_custom_call.1} parent=79 // pred_fallthru
          _
      $region80: #{tpu_custom_call.1} parent=5 // pred_fallthru
        _
    $region6: #{tpu_custom_call.1} parent=1 // loop_footer
      %s26 = sadd.s32 1, %s22
    $region7: #{tpu_custom_call.1} parent=1 // loop_footer_branch
      %21 = sbr.rel target = $region3
    $region8: #{tpu_custom_call.1} parent=1 // loop_exit
      _
    %2104 = vsyncpa [#allocation5], 1
    %s2105 = scalar_lea.sflag [#allocation5], 1
    %2106 = vsyncpa %s2105, 1
    %2107 = vsyncpa [#allocation8], 1
    %2108 = vsyncpa [#allocation11], 1
    %2109 = vsyncpa [#allocation6], 1
    %s2110 = scalar_lea.sflag [#allocation6], 1
    %2111 = vsyncpa %s2110, 1

</llo_original>
